<compile_context>
chip_gen: v7x
topology: tpu7x:2x2x1
jax: 0.10.0
libtpu: 0.0.40
codegen_flags: <defaults>
</compile_context>

<pallas_src>
import jax
import jax.numpy as jnp
from jax.experimental import pallas as pl
from jax.experimental.pallas import tpu as pltpu

K_FEATURES = 432 * 288          # 124416 = 2^9 * 3^5
TK = 31104                      # K tile: 124416 / 31104 = 4 grid steps
CH = 1152                       # inner chunk (9 vregs); 31104 / 1152 = 27 chunks
N_LANES = 128                   # lane-dense output width (real result in col 0)
MAX_TB = 8                      # batch tile (sublane multiple) used when b > 8


def _linear_relu_kernel(x_ref, w_ref, b_ref, o_ref, acc_ref):
    """One (batch-block, K-tile) step of out = relu(x @ w.T + b).

    x_ref  : (BB, TK)       input tile
    w_ref  : (1, TK)        lane-dense weight tile (no padding)
    b_ref  : (1, N_LANES)   bias broadcast across lanes
    o_ref  : (BB, N_LANES)  output block (column 0 carries the result)
    acc_ref: (BB, CH) f32   partial sums, carried across the K grid axis
    """
    k = pl.program_id(1)

    @pl.when(k == 0)
    def _():
        acc_ref[...] = jnp.zeros_like(acc_ref)

    # VPU multiply-accumulate over static, 128-aligned chunks (no MXU, no
    # dynamic lane offsets, intermediates stay at register scale).
    acc = acc_ref[...]
    for c in range(TK // CH):
        lo = c * CH
        acc = acc + x_ref[:, lo:lo + CH] * w_ref[:, lo:lo + CH]
    acc_ref[...] = acc

    @pl.when(k == pl.num_programs(1) - 1)
    def _():
        # One cross-lane reduction total, then bias + ReLU, lane-dense store.
        total = jnp.sum(acc_ref[...], axis=1, keepdims=True)        # (BB, 1)
        out = jnp.maximum(total + b_ref[...], 0.0)                  # (BB, 128)
        o_ref[...] = out.astype(o_ref.dtype)


def net_forward(x, weight, bias):
    """Pallas equivalent of Net.forward.

    x      : any shape whose elements flatten to multiples of K_FEATURES
             (e.g. (B, 432, 288))
    weight : (1, K_FEATURES)   -- torch nn.Linear convention
    bias   : (1,)
    returns: (B, 1) float32
    """
    x2 = x.reshape(-1, K_FEATURES).astype(jnp.float32)   # == x.view(-1, 432*288)
    b = x2.shape[0]

    # Batch handling: pass the true batch straight through when it fits one
    # sublane block (block dim == full array dim is legal); only pad when b > 8.
    if b <= MAX_TB:
        bb = b
        x_in = x2
    else:
        bb = MAX_TB
        pad = (-b) % MAX_TB
        x_in = jnp.pad(x2, ((0, pad), (0, 0))) if pad else x2
    nb = x_in.shape[0] // bb

    w2 = weight.reshape(1, K_FEATURES).astype(jnp.float32)          # lane-dense
    b2 = jnp.broadcast_to(bias.reshape(1, 1).astype(jnp.float32), (1, N_LANES))

    grid = (nb, K_FEATURES // TK)   # (parallel batch blocks, K reduction steps)
    # TODO(synk): on v7x a 2-way parallel split of the K axis (partial sums
    # combined in the wrapper) could use both TensorCores; skipped for simplicity.

    out = pl.pallas_call(
        _linear_relu_kernel,
        out_shape=jax.ShapeDtypeStruct((nb * bb, N_LANES), jnp.float32),
        grid_spec=pltpu.PrefetchScalarGridSpec(
            num_scalar_prefetch=0,
            grid=grid,
            in_specs=[
                pl.BlockSpec((bb, TK), lambda bi, ki: (bi, ki)),
                pl.BlockSpec((1, TK), lambda bi, ki: (0, ki)),
                pl.BlockSpec((1, N_LANES), lambda bi, ki: (0, 0)),
            ],
            out_specs=pl.BlockSpec((bb, N_LANES), lambda bi, ki: (bi, 0)),
            scratch_shapes=[pltpu.VMEM((bb, CH), jnp.float32)],
        ),
        compiler_params=pltpu.CompilerParams(
            dimension_semantics=("parallel", "arbitrary"),
        ),
    )(x_in, w2, b2)

    return out[:b, :1]


if __name__ == "__main__":
    key = jax.random.PRNGKey(0)
    kx, kw, kb = jax.random.split(key, 3)

    # Small batch, input shaped like the image the Linear(432*288, 1) implies.
    x = jax.random.normal(kx, (2, 432, 288), dtype=jnp.float32)

    # Deterministic parameter init (shapes match nn.Linear(432*288, 1)).
    bound = 1.0 / (K_FEATURES ** 0.5)
    weight = jax.random.uniform(kw, (1, K_FEATURES), jnp.float32, -bound, bound)
    bias = jax.random.uniform(kb, (1,), jnp.float32, -bound, bound)

    out = net_forward(x, weight, bias)
    out = jax.block_until_ready(out)

    # Reference check in plain JAX.
    ref = jnp.maximum(x.reshape(-1, K_FEATURES) @ weight.T + bias, 0.0)
    assert out.shape == (2, 1)
    assert jnp.allclose(out, ref, atol=1e-3, rtol=1e-3), (
        f"max abs err {jnp.max(jnp.abs(out - ref))}"
    )

    print("KERNEL_OK")
</pallas_src>

<mosaic_0001>
module attributes {stable_mosaic.version = 11 : i64} {
  func.func @_linear_relu_kernel(%arg0: i32, %arg1: i32, %arg2: memref<2x31104xf32, #tpu.memory_space<vmem>>, %arg3: memref<1x31104xf32, #tpu.memory_space<vmem>>, %arg4: memref<1x128xf32, #tpu.memory_space<vmem>>, %arg5: memref<2x128xf32, #tpu.memory_space<vmem>>, %arg6: memref<2x1152xf32, #tpu.memory_space<vmem>>) attributes {dimension_semantics = [#tpu.dimension_semantics<parallel>, #tpu.dimension_semantics<arbitrary>], iteration_bounds = array<i64: 1, 4>, scalar_prefetch = 0 : i64, scratch_operands = 1 : i64, tpu.core_type = #tpu.core_type<tc>, window_params = [{transform_indices = @transform_0, window_bounds = array<i64: 2, 31104>}, {transform_indices = @transform_1, window_bounds = array<i64: 1, 31104>}, {pipeline_mode = #tpu.pipeline_mode<synchronous>, transform_indices = @transform_2, window_bounds = array<i64: 1, 128>}, {transform_indices = @transform_3, window_bounds = array<i64: 2, 128>}]} {
    %c0_i32 = arith.constant 0 : i32
    %0 = arith.cmpi eq, %arg1, %c0_i32 : i32
    %1 = arith.extui %0 : i1 to i32
    %c0_i32_0 = arith.constant 0 : i32
    %2 = arith.cmpi ne, %1, %c0_i32_0 : i32
    scf.if %2 {
      %cst = arith.constant 0.000000e+00 : f32
      %143 = vector.broadcast %cst : f32 to vector<2x1152xf32>
      %c0_87 = arith.constant 0 : index
      %c0_88 = arith.constant 0 : index
      %144 = vector.load %arg6[%c0_87, %c0_88] : memref<2x1152xf32, #tpu.memory_space<vmem>>, vector<2x1152xf32>
      tpu.vector_store %arg6[%c0_87, %c0_88], %143 {strides = array<i32>} : memref<2x1152xf32, #tpu.memory_space<vmem>>, vector<2x1152xf32>,
    } else {
    }
    %c0 = arith.constant 0 : index
    %c0_1 = arith.constant 0 : index
    %3 = vector.load %arg6[%c0, %c0_1] : memref<2x1152xf32, #tpu.memory_space<vmem>>, vector<2x1152xf32>
    %c0_2 = arith.constant 0 : index
    %c0_3 = arith.constant 0 : index
    %4 = vector.load %arg2[%c0_2, %c0_3] : memref<2x31104xf32, #tpu.memory_space<vmem>>, vector<2x1152xf32>
    %c0_4 = arith.constant 0 : index
    %c0_5 = arith.constant 0 : index
    %5 = vector.load %arg3[%c0_4, %c0_5] : memref<1x31104xf32, #tpu.memory_space<vmem>>, vector<1x1152xf32>
    %6 = vector.broadcast %5 : vector<1x1152xf32> to vector<2x1152xf32>
    %7 = arith.mulf %4, %6 : vector<2x1152xf32>
    %8 = arith.addf %3, %7 : vector<2x1152xf32>
    %c0_6 = arith.constant 0 : index
    %c1152 = arith.constant 1152 : index
    %9 = vector.load %arg2[%c0_6, %c1152] : memref<2x31104xf32, #tpu.memory_space<vmem>>, vector<2x1152xf32>
    %c0_7 = arith.constant 0 : index
    %c1152_8 = arith.constant 1152 : index
    %10 = vector.load %arg3[%c0_7, %c1152_8] : memref<1x31104xf32, #tpu.memory_space<vmem>>, vector<1x1152xf32>
    %11 = vector.broadcast %10 : vector<1x1152xf32> to vector<2x1152xf32>
    %12 = arith.mulf %9, %11 : vector<2x1152xf32>
    %13 = arith.addf %8, %12 : vector<2x1152xf32>
    %c0_9 = arith.constant 0 : index
    %c2304 = arith.constant 2304 : index
    %14 = vector.load %arg2[%c0_9, %c2304] : memref<2x31104xf32, #tpu.memory_space<vmem>>, vector<2x1152xf32>
    %c0_10 = arith.constant 0 : index
    %c2304_11 = arith.constant 2304 : index
    %15 = vector.load %arg3[%c0_10, %c2304_11] : memref<1x31104xf32, #tpu.memory_space<vmem>>, vector<1x1152xf32>
    %16 = vector.broadcast %15 : vector<1x1152xf32> to vector<2x1152xf32>
    %17 = arith.mulf %14, %16 : vector<2x1152xf32>
    %18 = arith.addf %13, %17 : vector<2x1152xf32>
    %c0_12 = arith.constant 0 : index
    %c3456 = arith.constant 3456 : index
    %19 = vector.load %arg2[%c0_12, %c3456] : memref<2x31104xf32, #tpu.memory_space<vmem>>, vector<2x1152xf32>
    %c0_13 = arith.constant 0 : index
    %c3456_14 = arith.constant 3456 : index
    %20 = vector.load %arg3[%c0_13, %c3456_14] : memref<1x31104xf32, #tpu.memory_space<vmem>>, vector<1x1152xf32>
    %21 = vector.broadcast %20 : vector<1x1152xf32> to vector<2x1152xf32>
    %22 = arith.mulf %19, %21 : vector<2x1152xf32>
    %23 = arith.addf %18, %22 : vector<2x1152xf32>
    %c0_15 = arith.constant 0 : index
    %c4608 = arith.constant 4608 : index
    %24 = vector.load %arg2[%c0_15, %c4608] : memref<2x31104xf32, #tpu.memory_space<vmem>>, vector<2x1152xf32>
    %c0_16 = arith.constant 0 : index
    %c4608_17 = arith.constant 4608 : index
    %25 = vector.load %arg3[%c0_16, %c4608_17] : memref<1x31104xf32, #tpu.memory_space<vmem>>, vector<1x1152xf32>
    %26 = vector.broadcast %25 : vector<1x1152xf32> to vector<2x1152xf32>
    %27 = arith.mulf %24, %26 : vector<2x1152xf32>
    %28 = arith.addf %23, %27 : vector<2x1152xf32>
    %c0_18 = arith.constant 0 : index
    %c5760 = arith.constant 5760 : index
    %29 = vector.load %arg2[%c0_18, %c5760] : memref<2x31104xf32, #tpu.memory_space<vmem>>, vector<2x1152xf32>
    %c0_19 = arith.constant 0 : index
    %c5760_20 = arith.constant 5760 : index
    %30 = vector.load %arg3[%c0_19, %c5760_20] : memref<1x31104xf32, #tpu.memory_space<vmem>>, vector<1x1152xf32>
    %31 = vector.broadcast %30 : vector<1x1152xf32> to vector<2x1152xf32>
    %32 = arith.mulf %29, %31 : vector<2x1152xf32>
    %33 = arith.addf %28, %32 : vector<2x1152xf32>
    %c0_21 = arith.constant 0 : index
    %c6912 = arith.constant 6912 : index
    %34 = vector.load %arg2[%c0_21, %c6912] : memref<2x31104xf32, #tpu.memory_space<vmem>>, vector<2x1152xf32>
    %c0_22 = arith.constant 0 : index
    %c6912_23 = arith.constant 6912 : index
    %35 = vector.load %arg3[%c0_22, %c6912_23] : memref<1x31104xf32, #tpu.memory_space<vmem>>, vector<1x1152xf32>
    %36 = vector.broadcast %35 : vector<1x1152xf32> to vector<2x1152xf32>
    %37 = arith.mulf %34, %36 : vector<2x1152xf32>
    %38 = arith.addf %33, %37 : vector<2x1152xf32>
    %c0_24 = arith.constant 0 : index
    %c8064 = arith.constant 8064 : index
    %39 = vector.load %arg2[%c0_24, %c8064] : memref<2x31104xf32, #tpu.memory_space<vmem>>, vector<2x1152xf32>
    %c0_25 = arith.constant 0 : index
    %c8064_26 = arith.constant 8064 : index
    %40 = vector.load %arg3[%c0_25, %c8064_26] : memref<1x31104xf32, #tpu.memory_space<vmem>>, vector<1x1152xf32>
    %41 = vector.broadcast %40 : vector<1x1152xf32> to vector<2x1152xf32>
    %42 = arith.mulf %39, %41 : vector<2x1152xf32>
    %43 = arith.addf %38, %42 : vector<2x1152xf32>
    %c0_27 = arith.constant 0 : index
    %c9216 = arith.constant 9216 : index
    %44 = vector.load %arg2[%c0_27, %c9216] : memref<2x31104xf32, #tpu.memory_space<vmem>>, vector<2x1152xf32>
    %c0_28 = arith.constant 0 : index
    %c9216_29 = arith.constant 9216 : index
    %45 = vector.load %arg3[%c0_28, %c9216_29] : memref<1x31104xf32, #tpu.memory_space<vmem>>, vector<1x1152xf32>
    %46 = vector.broadcast %45 : vector<1x1152xf32> to vector<2x1152xf32>
    %47 = arith.mulf %44, %46 : vector<2x1152xf32>
    %48 = arith.addf %43, %47 : vector<2x1152xf32>
    %c0_30 = arith.constant 0 : index
    %c10368 = arith.constant 10368 : index
    %49 = vector.load %arg2[%c0_30, %c10368] : memref<2x31104xf32, #tpu.memory_space<vmem>>, vector<2x1152xf32>
    %c0_31 = arith.constant 0 : index
    %c10368_32 = arith.constant 10368 : index
    %50 = vector.load %arg3[%c0_31, %c10368_32] : memref<1x31104xf32, #tpu.memory_space<vmem>>, vector<1x1152xf32>
    %51 = vector.broadcast %50 : vector<1x1152xf32> to vector<2x1152xf32>
    %52 = arith.mulf %49, %51 : vector<2x1152xf32>
    %53 = arith.addf %48, %52 : vector<2x1152xf32>
    %c0_33 = arith.constant 0 : index
    %c11520 = arith.constant 11520 : index
    %54 = vector.load %arg2[%c0_33, %c11520] : memref<2x31104xf32, #tpu.memory_space<vmem>>, vector<2x1152xf32>
    %c0_34 = arith.constant 0 : index
    %c11520_35 = arith.constant 11520 : index
    %55 = vector.load %arg3[%c0_34, %c11520_35] : memref<1x31104xf32, #tpu.memory_space<vmem>>, vector<1x1152xf32>
    %56 = vector.broadcast %55 : vector<1x1152xf32> to vector<2x1152xf32>
    %57 = arith.mulf %54, %56 : vector<2x1152xf32>
    %58 = arith.addf %53, %57 : vector<2x1152xf32>
    %c0_36 = arith.constant 0 : index
    %c12672 = arith.constant 12672 : index
    %59 = vector.load %arg2[%c0_36, %c12672] : memref<2x31104xf32, #tpu.memory_space<vmem>>, vector<2x1152xf32>
    %c0_37 = arith.constant 0 : index
    %c12672_38 = arith.constant 12672 : index
    %60 = vector.load %arg3[%c0_37, %c12672_38] : memref<1x31104xf32, #tpu.memory_space<vmem>>, vector<1x1152xf32>
    %61 = vector.broadcast %60 : vector<1x1152xf32> to vector<2x1152xf32>
    %62 = arith.mulf %59, %61 : vector<2x1152xf32>
    %63 = arith.addf %58, %62 : vector<2x1152xf32>
    %c0_39 = arith.constant 0 : index
    %c13824 = arith.constant 13824 : index
    %64 = vector.load %arg2[%c0_39, %c13824] : memref<2x31104xf32, #tpu.memory_space<vmem>>, vector<2x1152xf32>
    %c0_40 = arith.constant 0 : index
    %c13824_41 = arith.constant 13824 : index
    %65 = vector.load %arg3[%c0_40, %c13824_41] : memref<1x31104xf32, #tpu.memory_space<vmem>>, vector<1x1152xf32>
    %66 = vector.broadcast %65 : vector<1x1152xf32> to vector<2x1152xf32>
    %67 = arith.mulf %64, %66 : vector<2x1152xf32>
    %68 = arith.addf %63, %67 : vector<2x1152xf32>
    %c0_42 = arith.constant 0 : index
    %c14976 = arith.constant 14976 : index
    %69 = vector.load %arg2[%c0_42, %c14976] : memref<2x31104xf32, #tpu.memory_space<vmem>>, vector<2x1152xf32>
    %c0_43 = arith.constant 0 : index
    %c14976_44 = arith.constant 14976 : index
    %70 = vector.load %arg3[%c0_43, %c14976_44] : memref<1x31104xf32, #tpu.memory_space<vmem>>, vector<1x1152xf32>
    %71 = vector.broadcast %70 : vector<1x1152xf32> to vector<2x1152xf32>
    %72 = arith.mulf %69, %71 : vector<2x1152xf32>
    %73 = arith.addf %68, %72 : vector<2x1152xf32>
    %c0_45 = arith.constant 0 : index
    %c16128 = arith.constant 16128 : index
    %74 = vector.load %arg2[%c0_45, %c16128] : memref<2x31104xf32, #tpu.memory_space<vmem>>, vector<2x1152xf32>
    %c0_46 = arith.constant 0 : index
    %c16128_47 = arith.constant 16128 : index
    %75 = vector.load %arg3[%c0_46, %c16128_47] : memref<1x31104xf32, #tpu.memory_space<vmem>>, vector<1x1152xf32>
    %76 = vector.broadcast %75 : vector<1x1152xf32> to vector<2x1152xf32>
    %77 = arith.mulf %74, %76 : vector<2x1152xf32>
    %78 = arith.addf %73, %77 : vector<2x1152xf32>
    %c0_48 = arith.constant 0 : index
    %c17280 = arith.constant 17280 : index
    %79 = vector.load %arg2[%c0_48, %c17280] : memref<2x31104xf32, #tpu.memory_space<vmem>>, vector<2x1152xf32>
    %c0_49 = arith.constant 0 : index
    %c17280_50 = arith.constant 17280 : index
    %80 = vector.load %arg3[%c0_49, %c17280_50] : memref<1x31104xf32, #tpu.memory_space<vmem>>, vector<1x1152xf32>
    %81 = vector.broadcast %80 : vector<1x1152xf32> to vector<2x1152xf32>
    %82 = arith.mulf %79, %81 : vector<2x1152xf32>
    %83 = arith.addf %78, %82 : vector<2x1152xf32>
    %c0_51 = arith.constant 0 : index
    %c18432 = arith.constant 18432 : index
    %84 = vector.load %arg2[%c0_51, %c18432] : memref<2x31104xf32, #tpu.memory_space<vmem>>, vector<2x1152xf32>
    %c0_52 = arith.constant 0 : index
    %c18432_53 = arith.constant 18432 : index
    %85 = vector.load %arg3[%c0_52, %c18432_53] : memref<1x31104xf32, #tpu.memory_space<vmem>>, vector<1x1152xf32>
    %86 = vector.broadcast %85 : vector<1x1152xf32> to vector<2x1152xf32>
    %87 = arith.mulf %84, %86 : vector<2x1152xf32>
    %88 = arith.addf %83, %87 : vector<2x1152xf32>
    %c0_54 = arith.constant 0 : index
    %c19584 = arith.constant 19584 : index
    %89 = vector.load %arg2[%c0_54, %c19584] : memref<2x31104xf32, #tpu.memory_space<vmem>>, vector<2x1152xf32>
    %c0_55 = arith.constant 0 : index
    %c19584_56 = arith.constant 19584 : index
    %90 = vector.load %arg3[%c0_55, %c19584_56] : memref<1x31104xf32, #tpu.memory_space<vmem>>, vector<1x1152xf32>
    %91 = vector.broadcast %90 : vector<1x1152xf32> to vector<2x1152xf32>
    %92 = arith.mulf %89, %91 : vector<2x1152xf32>
    %93 = arith.addf %88, %92 : vector<2x1152xf32>
    %c0_57 = arith.constant 0 : index
    %c20736 = arith.constant 20736 : index
    %94 = vector.load %arg2[%c0_57, %c20736] : memref<2x31104xf32, #tpu.memory_space<vmem>>, vector<2x1152xf32>
    %c0_58 = arith.constant 0 : index
    %c20736_59 = arith.constant 20736 : index
    %95 = vector.load %arg3[%c0_58, %c20736_59] : memref<1x31104xf32, #tpu.memory_space<vmem>>, vector<1x1152xf32>
    %96 = vector.broadcast %95 : vector<1x1152xf32> to vector<2x1152xf32>
    %97 = arith.mulf %94, %96 : vector<2x1152xf32>
    %98 = arith.addf %93, %97 : vector<2x1152xf32>
    %c0_60 = arith.constant 0 : index
    %c21888 = arith.constant 21888 : index
    %99 = vector.load %arg2[%c0_60, %c21888] : memref<2x31104xf32, #tpu.memory_space<vmem>>, vector<2x1152xf32>
    %c0_61 = arith.constant 0 : index
    %c21888_62 = arith.constant 21888 : index
    %100 = vector.load %arg3[%c0_61, %c21888_62] : memref<1x31104xf32, #tpu.memory_space<vmem>>, vector<1x1152xf32>
    %101 = vector.broadcast %100 : vector<1x1152xf32> to vector<2x1152xf32>
    %102 = arith.mulf %99, %101 : vector<2x1152xf32>
    %103 = arith.addf %98, %102 : vector<2x1152xf32>
    %c0_63 = arith.constant 0 : index
    %c23040 = arith.constant 23040 : index
    %104 = vector.load %arg2[%c0_63, %c23040] : memref<2x31104xf32, #tpu.memory_space<vmem>>, vector<2x1152xf32>
    %c0_64 = arith.constant 0 : index
    %c23040_65 = arith.constant 23040 : index
    %105 = vector.load %arg3[%c0_64, %c23040_65] : memref<1x31104xf32, #tpu.memory_space<vmem>>, vector<1x1152xf32>
    %106 = vector.broadcast %105 : vector<1x1152xf32> to vector<2x1152xf32>
    %107 = arith.mulf %104, %106 : vector<2x1152xf32>
    %108 = arith.addf %103, %107 : vector<2x1152xf32>
    %c0_66 = arith.constant 0 : index
    %c24192 = arith.constant 24192 : index
    %109 = vector.load %arg2[%c0_66, %c24192] : memref<2x31104xf32, #tpu.memory_space<vmem>>, vector<2x1152xf32>
    %c0_67 = arith.constant 0 : index
    %c24192_68 = arith.constant 24192 : index
    %110 = vector.load %arg3[%c0_67, %c24192_68] : memref<1x31104xf32, #tpu.memory_space<vmem>>, vector<1x1152xf32>
    %111 = vector.broadcast %110 : vector<1x1152xf32> to vector<2x1152xf32>
    %112 = arith.mulf %109, %111 : vector<2x1152xf32>
    %113 = arith.addf %108, %112 : vector<2x1152xf32>
    %c0_69 = arith.constant 0 : index
    %c25344 = arith.constant 25344 : index
    %114 = vector.load %arg2[%c0_69, %c25344] : memref<2x31104xf32, #tpu.memory_space<vmem>>, vector<2x1152xf32>
    %c0_70 = arith.constant 0 : index
    %c25344_71 = arith.constant 25344 : index
    %115 = vector.load %arg3[%c0_70, %c25344_71] : memref<1x31104xf32, #tpu.memory_space<vmem>>, vector<1x1152xf32>
    %116 = vector.broadcast %115 : vector<1x1152xf32> to vector<2x1152xf32>
    %117 = arith.mulf %114, %116 : vector<2x1152xf32>
    %118 = arith.addf %113, %117 : vector<2x1152xf32>
    %c0_72 = arith.constant 0 : index
    %c26496 = arith.constant 26496 : index
    %119 = vector.load %arg2[%c0_72, %c26496] : memref<2x31104xf32, #tpu.memory_space<vmem>>, vector<2x1152xf32>
    %c0_73 = arith.constant 0 : index
    %c26496_74 = arith.constant 26496 : index
    %120 = vector.load %arg3[%c0_73, %c26496_74] : memref<1x31104xf32, #tpu.memory_space<vmem>>, vector<1x1152xf32>
    %121 = vector.broadcast %120 : vector<1x1152xf32> to vector<2x1152xf32>
    %122 = arith.mulf %119, %121 : vector<2x1152xf32>
    %123 = arith.addf %118, %122 : vector<2x1152xf32>
    %c0_75 = arith.constant 0 : index
    %c27648 = arith.constant 27648 : index
    %124 = vector.load %arg2[%c0_75, %c27648] : memref<2x31104xf32, #tpu.memory_space<vmem>>, vector<2x1152xf32>
    %c0_76 = arith.constant 0 : index
    %c27648_77 = arith.constant 27648 : index
    %125 = vector.load %arg3[%c0_76, %c27648_77] : memref<1x31104xf32, #tpu.memory_space<vmem>>, vector<1x1152xf32>
    %126 = vector.broadcast %125 : vector<1x1152xf32> to vector<2x1152xf32>
    %127 = arith.mulf %124, %126 : vector<2x1152xf32>
    %128 = arith.addf %123, %127 : vector<2x1152xf32>
    %c0_78 = arith.constant 0 : index
    %c28800 = arith.constant 28800 : index
    %129 = vector.load %arg2[%c0_78, %c28800] : memref<2x31104xf32, #tpu.memory_space<vmem>>, vector<2x1152xf32>
    %c0_79 = arith.constant 0 : index
    %c28800_80 = arith.constant 28800 : index
    %130 = vector.load %arg3[%c0_79, %c28800_80] : memref<1x31104xf32, #tpu.memory_space<vmem>>, vector<1x1152xf32>
    %131 = vector.broadcast %130 : vector<1x1152xf32> to vector<2x1152xf32>
    %132 = arith.mulf %129, %131 : vector<2x1152xf32>
    %133 = arith.addf %128, %132 : vector<2x1152xf32>
    %c0_81 = arith.constant 0 : index
    %c29952 = arith.constant 29952 : index
    %134 = vector.load %arg2[%c0_81, %c29952] : memref<2x31104xf32, #tpu.memory_space<vmem>>, vector<2x1152xf32>
    %c0_82 = arith.constant 0 : index
    %c29952_83 = arith.constant 29952 : index
    %135 = vector.load %arg3[%c0_82, %c29952_83] : memref<1x31104xf32, #tpu.memory_space<vmem>>, vector<1x1152xf32>
    %136 = vector.broadcast %135 : vector<1x1152xf32> to vector<2x1152xf32>
    %137 = arith.mulf %134, %136 : vector<2x1152xf32>
    %138 = arith.addf %133, %137 : vector<2x1152xf32>
    %c0_84 = arith.constant 0 : index
    %c0_85 = arith.constant 0 : index
    %139 = vector.load %arg6[%c0_84, %c0_85] : memref<2x1152xf32, #tpu.memory_space<vmem>>, vector<2x1152xf32>
    tpu.vector_store %arg6[%c0_84, %c0_85], %138 {strides = array<i32>} : memref<2x1152xf32, #tpu.memory_space<vmem>>, vector<2x1152xf32>,
    %c3_i32 = arith.constant 3 : i32
    %140 = arith.cmpi eq, %arg1, %c3_i32 : i32
    %141 = arith.extui %140 : i1 to i32
    %c0_i32_86 = arith.constant 0 : i32
    %142 = arith.cmpi ne, %141, %c0_i32_86 : i32
    scf.if %142 {
      %c0_87 = arith.constant 0 : index
      %c0_88 = arith.constant 0 : index
      %143 = vector.load %arg6[%c0_87, %c0_88] : memref<2x1152xf32, #tpu.memory_space<vmem>>, vector<2x1152xf32>
      %cst = arith.constant dense<0.000000e+00> : vector<2xf32>
      %144 = vector.multi_reduction <add>, %143, %cst [1] : vector<2x1152xf32> to vector<2xf32>
      %145 = vector.shape_cast %144 : vector<2xf32> to vector<2x1xf32>
      %c0_89 = arith.constant 0 : index
      %c0_90 = arith.constant 0 : index
      %146 = vector.load %arg4[%c0_89, %c0_90] : memref<1x128xf32, #tpu.memory_space<vmem>>, vector<1x128xf32>
      %147 = vector.broadcast %145 : vector<2x1xf32> to vector<2x128xf32>
      %148 = vector.broadcast %146 : vector<1x128xf32> to vector<2x128xf32>
      %149 = arith.addf %147, %148 : vector<2x128xf32>
      %cst_91 = arith.constant 0.000000e+00 : f32
      %150 = vector.broadcast %cst_91 : f32 to vector<2x128xf32>
      %151 = arith.maximumf %149, %150 : vector<2x128xf32>
      %c0_92 = arith.constant 0 : index
      %c0_93 = arith.constant 0 : index
      %152 = vector.load %arg5[%c0_92, %c0_93] : memref<2x128xf32, #tpu.memory_space<vmem>>, vector<2x128xf32>
      tpu.vector_store %arg5[%c0_92, %c0_93], %151 {strides = array<i32>} : memref<2x128xf32, #tpu.memory_space<vmem>>, vector<2x128xf32>,
    } else {
    }
    return
  }
  func.func @transform_0(%arg0: i32, %arg1: i32) -> (i32, i32) {
    %c0_i32 = arith.constant 0 : i32
    return %arg0, %arg1 : i32, i32
  }
  func.func @transform_1(%arg0: i32, %arg1: i32) -> (i32, i32) {
    %c0_i32 = arith.constant 0 : i32
    %c0_i32_0 = arith.constant 0 : i32
    return %c0_i32, %arg1 : i32, i32
  }
  func.func @transform_2(%arg0: i32, %arg1: i32) -> (i32, i32) {
    %c0_i32 = arith.constant 0 : i32
    %c0_i32_0 = arith.constant 0 : i32
    %c0_i32_1 = arith.constant 0 : i32
    return %c0_i32, %c0_i32_0 : i32, i32
  }
  func.func @transform_3(%arg0: i32, %arg1: i32) -> (i32, i32) {
    %c0_i32 = arith.constant 0 : i32
    %c0_i32_0 = arith.constant 0 : i32
    return %arg0, %c0_i32 : i32, i32
  }
}

</mosaic_0001>

<llo_original>
// kernel: tpu_custom_call.1
$region0: #{tpu_custom_call.1}
  #allocation0 [shape = 'u32[]', space=smem, size = 0x4, offset = 0x4, fixed_abs, tag = 'smem constant byte address 0x4 - core index']
  #allocation1 [shape = 'u32[144,128]{1,0:T(1,128)}', space=vmem, size = 0x12000, scoped, tag = 'internal scratch']
  #allocation2 [shape = 'f32[2,1152]{1,0:T(2,128)}', space=vmem, size = 0x2400, scoped, tag = 'scratch operand']
  %s0 = inlined_call_operand.hbm [shape: f32[2,124416], index: 0, kind: input, shape index: {}]
  %s1 = inlined_call_operand.hbm [shape: f32[1,124416], index: 1, kind: input, shape index: {}]
  %s2 = inlined_call_operand.vmem [shape: f32[1,128], index: 2, kind: input, shape index: {}]
  %s3 = inlined_call_operand.hbm [shape: f32[2,128], index: 3, kind: output, shape index: {}]
  %s4 = sld [smem:[#allocation0]]
  $region61: #{tpu_custom_call.1} parent=0
    _
  %s6 = ssub.s32 1, %s4
  %s7 = scalar_select 0, %s6, %s4
  $region1: #{tpu_custom_call.1} parent=0
    #allocation3 [shape = 'u8[497664]{0}', space=vmem, size = 0x79800, scoped, tag = 'input window, operand 0']
    #allocation4 [shape = 's32[2]{0}', space=sflag, size = 0x8, scoped, tag = 'scoped memory for tpu_custom_call.1']
    #allocation5 [shape = 's32[2]{0}', space=sflag, size = 0x8, scoped, tag = 'scoped memory for tpu_custom_call.1']
    #allocation6 [shape = 'u8[248832]{0}', space=vmem, size = 0x3cc00, scoped, tag = 'input window, operand 1']
    #allocation7 [shape = 's32[2]{0}', space=sflag, size = 0x8, scoped, tag = 'scoped memory for tpu_custom_call.1']
    #allocation8 [shape = 'u8[1024]{0}', space=vmem, size = 0x400, scoped, tag = 'output window, operand 0, single buffered']
    %8 = vsyncpa [#allocation4], 0
    %s9 = scalar_lea.sflag [#allocation4], 1
    %10 = vsyncpa %s9, 0
    %11 = vsyncpa [#allocation7], 0
    %s12 = scalar_lea.sflag [#allocation7], 1
    %13 = vsyncpa %s12, 0
    %14 = vsyncpa [#allocation5], 0
    loop: start=0, step=1, limit=6
    $region2: #{tpu_custom_call.1} parent=1 // loop_pre_header
      _
    $region3: #{tpu_custom_call.1} parent=1 // loop_header
      %s16 = sphi 0, %s20
      %p17 = scmp.ge.s32.totalorder %s16, 6
      %s23 = sphi 0, %s35
      %s24 = sphi 0, %s31
      %s25 = sphi 0, %s23
      %s26 = sphi 0, %s24
      %s27 = sphi 0, %s25
      %s28 = sphi 0, %s26
      %s40 = sphi 0, %s42
      %s43 = sphi 0, %s40
      %s44 = sphi 0, %s43
      %s60 = sphi 0, %s44
      %s66 = sphi 0, %s68
      %s69 = sphi 0, %s66
      %s70 = sphi 0, %s69
      %s86 = sphi 0, %s70
      %s90 = sphi 0, %s90
      %s92 = sphi 0, %s90
      %s93 = sphi 0, %s92
      %s107 = sphi 0, %s93
      %s113 = sphi 0, %s115
      %s116 = sphi 0, %s113
      %s117 = sphi 0, %s116
      %s133 = sphi 0, %s117
    $region4: #{tpu_custom_call.1} parent=1 // loop_header_branch
      %19 = sbr.rel (%p17) target = $region8
    $region5: #{tpu_custom_call.1} parent=1 // loop_body
      %s21 = ssub.s32 %s16, 1
      %s22 = ssub.s32 %s16, 2
      %s29 = sadd.s32 1, %s24
      %p30 = scmp.ge.s32.totalorder %s29, 4
      %s31 = scalar_select %p30, 0, %s29
      %s32 = sadd.s32 1, %s23
      %s33 = scalar_select %p30, %s32, %s23
      %p34 = scmp.ge.s32.totalorder %s33, 1
      %s35 = scalar_select %p34, 0, %s33
      %s36 = ssub.s32 %s23, %s35
      %s37 = ssub.s32 %s24, %s31
      %s38 = sor.u32 %s36, %s37
      %p39 = scmp.eq.s32.totalorder %s38, 0
      %s41 = sadd.s32 %s40, 1
      %s42 = scalar_select %p39, %s40, %s41
      %p45 = pneg %p39
      %p46 = scmp.eq.s32.totalorder %s16, 3
      %p47 = por %p45, %p46
      %p48 = scmp.ne.s32.totalorder %s40, %s43
      %p49 = scmp.eq.s32.totalorder %s16, 0
      %p50 = por %p48, %p49
      %p51 = scmp.ne.s32.totalorder %s40, %s43
      %p52 = scmp.eq.s32.totalorder %s21, 3
      %p53 = por %p51, %p52
      %p54 = scmp.ne.s32.totalorder %s43, %s44
      %p55 = scmp.eq.s32.totalorder %s21, 0
      %p56 = por %p54, %p55
      %p57 = scmp.ne.s32.totalorder %s43, %s44
      %p58 = scmp.eq.s32.totalorder %s22, 3
      %p59 = por %p57, %p58
      %p61 = scmp.ne.s32.totalorder %s44, %s60
      %p62 = scmp.eq.s32.totalorder %s22, 0
      %p63 = por %p61, %p62
      %s64 = ssub.s32 %s24, %s31
      %p65 = scmp.eq.s32.totalorder %s64, 0
      %s67 = sadd.s32 %s66, 1
      %s68 = scalar_select %p65, %s66, %s67
      %p71 = pneg %p65
      %p72 = scmp.eq.s32.totalorder %s16, 3
      %p73 = por %p71, %p72
      %p74 = scmp.ne.s32.totalorder %s66, %s69
      %p75 = scmp.eq.s32.totalorder %s16, 0
      %p76 = por %p74, %p75
      %p77 = scmp.ne.s32.totalorder %s66, %s69
      %p78 = scmp.eq.s32.totalorder %s21, 3
      %p79 = por %p77, %p78
      %p80 = scmp.ne.s32.totalorder %s69, %s70
      %p81 = scmp.eq.s32.totalorder %s21, 0
      %p82 = por %p80, %p81
      %p83 = scmp.ne.s32.totalorder %s69, %s70
      %p84 = scmp.eq.s32.totalorder %s22, 3
      %p85 = por %p83, %p84
      %p87 = scmp.ne.s32.totalorder %s70, %s86
      %p88 = scmp.eq.s32.totalorder %s22, 0
      %p89 = por %p87, %p88
      %s91 = sadd.s32 %s90, 1
      %p94 = scmp.eq.s32.totalorder %s16, 3
      %p95 = scmp.ne.s32.totalorder %s90, %s92
      %p96 = scmp.eq.s32.totalorder %s16, 0
      %p97 = por %p95, %p96
      %p98 = scmp.ne.s32.totalorder %s90, %s92
      %p99 = scmp.eq.s32.totalorder %s21, 3
      %p100 = por %p98, %p99
      %p101 = scmp.ne.s32.totalorder %s92, %s93
      %p102 = scmp.eq.s32.totalorder %s21, 0
      %p103 = por %p101, %p102
      %p104 = scmp.ne.s32.totalorder %s92, %s93
      %p105 = scmp.eq.s32.totalorder %s22, 3
      %p106 = por %p104, %p105
      %p108 = scmp.ne.s32.totalorder %s93, %s107
      %p109 = scmp.eq.s32.totalorder %s22, 0
      %p110 = por %p108, %p109
      %s111 = ssub.s32 %s23, %s35
      %p112 = scmp.eq.s32.totalorder %s111, 0
      %s114 = sadd.s32 %s113, 1
      %s115 = scalar_select %p112, %s113, %s114
      %p118 = pneg %p112
      %p119 = scmp.eq.s32.totalorder %s16, 3
      %p120 = por %p118, %p119
      %p121 = scmp.ne.s32.totalorder %s113, %s116
      %p122 = scmp.eq.s32.totalorder %s16, 0
      %p123 = por %p121, %p122
      %p124 = scmp.ne.s32.totalorder %s113, %s116
      %p125 = scmp.eq.s32.totalorder %s21, 3
      %p126 = por %p124, %p125
      %p127 = scmp.ne.s32.totalorder %s116, %s117
      %p128 = scmp.eq.s32.totalorder %s21, 0
      %p129 = por %p127, %p128
      %p130 = scmp.ne.s32.totalorder %s116, %s117
      %p131 = scmp.eq.s32.totalorder %s22, 3
      %p132 = por %p130, %p131
      %p134 = scmp.ne.s32.totalorder %s117, %s133
      %p135 = scmp.eq.s32.totalorder %s22, 0
      %p136 = por %p134, %p135
      %p137 = scmp.le.s32.totalorder 1, %s16
      %p138 = scmp.lt.s32.totalorder %s16, 5
      %p139 = pnand %p137, %p138
      %p140 = pneg %p139
      // Predicated region
      $region9: #{tpu_custom_call.1} parent=5 // pred_check
        _
      $region10: #{tpu_custom_call.1} parent=5 // pred_check_branch
        %142 = sbr.rel (%p139) target = $region12
      $region11: #{tpu_custom_call.1} parent=5 // pred_region
        %s143 = ssub.s32 %s16, 1
        // Predicated region
        $region13: #{tpu_custom_call.1} parent=11 // pred_check
          %p144 = pneg %p103
        $region14: #{tpu_custom_call.1} parent=11 // pred_check_branch
          %146 = sbr.rel (%p144) target = $region16
        $region15: #{tpu_custom_call.1} parent=11 // pred_region
          _
        $region16: #{tpu_custom_call.1} parent=11 // pred_fallthru
          _
      $region12: #{tpu_custom_call.1} parent=5 // pred_fallthru
        _
      %p147 = scmp.lt.s32.totalorder %s16, 4
      // Predicated region
      $region17: #{tpu_custom_call.1} parent=5 // pred_check
        %p148 = pneg %p147
      $region18: #{tpu_custom_call.1} parent=5 // pred_check_branch
        %150 = sbr.rel (%p148) target = $region20
      $region19: #{tpu_custom_call.1} parent=5 // pred_region
        // Predicated region
        $region21: #{tpu_custom_call.1} parent=19 // pred_check
          %p151 = pneg %p50
        $region22: #{tpu_custom_call.1} parent=19 // pred_check_branch
          %153 = sbr.rel (%p151) target = $region24
        $region23: #{tpu_custom_call.1} parent=19 // pred_region
          %s154 = sand.u32 %s40, 1
          %s155 = scalar_lea.sflag [#allocation4], %s154
          %s156 = sand.u32 %s40, 1
          %s157 = smul.addr %s156, 486
          %s158 = scalar_lea.vmem [#allocation3], %s157
          %s159 = smul.u32 243, %s24
          %s161 = ssub.s32 7776, 7776
          %162 = vsyncadd %s155, %s161
          %s163 = smul.addr %s23, 972
          %s164 = sadd.s32 %s159, %s163
          %s165 = smul.addr %s164, 32
          %s166 = scalar_lea.hbm %s0, %s165
          %s168 = sshll.u32 %s158, 4
          %s169 = int_to_ptr.vmem [resolvable:$true] %s168
          %171 = dma.hbm_to_vmem [thread:$0]  %s166, 7776, %s169, %s155
        $region24: #{tpu_custom_call.1} parent=19 // pred_fallthru
          _
        // Predicated region
        $region25: #{tpu_custom_call.1} parent=19 // pred_check
          %p172 = pneg %p76
        $region26: #{tpu_custom_call.1} parent=19 // pred_check_branch
          %174 = sbr.rel (%p172) target = $region28
        $region27: #{tpu_custom_call.1} parent=19 // pred_region
          %s175 = sand.u32 %s66, 1
          %s176 = scalar_lea.sflag [#allocation7], %s175
          %s177 = sand.u32 %s66, 1
          %s178 = smul.addr %s177, 243
          %s179 = scalar_lea.vmem [#allocation6], %s178
          %s180 = smul.u32 243, %s24
          %s182 = ssub.s32 3888, 3888
          %183 = vsyncadd %s176, %s182
          %s184 = smul.addr %s180, 16
          %s185 = scalar_lea.hbm %s1, %s184
          %s187 = sshll.u32 %s179, 4
          %s188 = int_to_ptr.vmem [resolvable:$true] %s187
          %190 = dma.hbm_to_vmem [thread:$0]  %s185, 3888, %s188, %s176
        $region28: #{tpu_custom_call.1} parent=19 // pred_fallthru
          _
      $region20: #{tpu_custom_call.1} parent=5 // pred_fallthru
        _
      %p191 = scmp.le.s32.totalorder 1, %s16
      %p192 = scmp.lt.s32.totalorder %s16, 5
      %p193 = pnand %p191, %p192
      %p194 = pneg %p193
      // Predicated region
      $region29: #{tpu_custom_call.1} parent=5 // pred_check
        _
      $region30: #{tpu_custom_call.1} parent=5 // pred_check_branch
        %196 = sbr.rel (%p193) target = $region32
      $region31: #{tpu_custom_call.1} parent=5 // pred_region
        %s197 = ssub.s32 %s16, 1
        %s198 = sand.u32 %s43, 1
        %s199 = scalar_lea.sflag [#allocation4], %s198
        %s200 = sand.u32 %s43, 1
        %s201 = smul.addr %s200, 486
        %s202 = scalar_lea.vmem [#allocation3], %s201
        // Predicated region
        $region33: #{tpu_custom_call.1} parent=31 // pred_check
          %p203 = pneg %p56
        $region34: #{tpu_custom_call.1} parent=31 // pred_check_branch
          %205 = sbr.rel (%p203) target = $region36
        $region35: #{tpu_custom_call.1} parent=31 // pred_region
          %206 = dma.done %s199, 7776
        $region36: #{tpu_custom_call.1} parent=31 // pred_fallthru
          _
        %s207 = sand.u32 %s69, 1
        %s208 = scalar_lea.sflag [#allocation7], %s207
        %s209 = sand.u32 %s69, 1
        %s210 = smul.addr %s209, 243
        %s211 = scalar_lea.vmem [#allocation6], %s210
        // Predicated region
        $region37: #{tpu_custom_call.1} parent=31 // pred_check
          %p212 = pneg %p82
        $region38: #{tpu_custom_call.1} parent=31 // pred_check_branch
          %214 = sbr.rel (%p212) target = $region40
        $region39: #{tpu_custom_call.1} parent=31 // pred_region
          %215 = dma.done %s208, 3888
        $region40: #{tpu_custom_call.1} parent=31 // pred_fallthru
          _
        %s216 = sand.u32 %s43, 1
        %s217 = scalar_lea.sflag [#allocation4], %s216
        %s218 = sand.u32 %s43, 1
        %s219 = smul.addr %s218, 486
        %s220 = scalar_lea.vmem [#allocation3], %s219
        %p221 = pneg %p56
        %p222 = pneg %p53
        %s223 = sand.u32 %s69, 1
        %s224 = scalar_lea.sflag [#allocation7], %s223
        %s225 = sand.u32 %s69, 1
        %s226 = smul.addr %s225, 243
        %s227 = scalar_lea.vmem [#allocation6], %s226
        %p228 = pneg %p82
        %p229 = pneg %p79
        %p230 = pneg %p103
        %p231 = pneg %p100
        %p232 = pneg %p129
        %p233 = pneg %p126
        %s234 = smul.u32 243, %s26
        %s235 = smul.u32 243, %s26
        %p236 = scmp.eq.s32.totalorder %s26, 0
        // Predicated region
        $region41: #{tpu_custom_call.1} parent=31 // pred_check
          %p237 = pneg %p236
        $region42: #{tpu_custom_call.1} parent=31 // pred_check_branch
          %239 = sbr.rel (%p237) target = $region44
        $region43: #{tpu_custom_call.1} parent=31 // pred_region
          %240 = vst [vmem:[#allocation2] sm:$0xff] 0.0
          %241 = vst [vmem:[#allocation2 + $0x8] sm:$0xff] 0.0
          %242 = vst [vmem:[#allocation2 + $0x10] sm:$0x3] 0.0
        $region44: #{tpu_custom_call.1} parent=31 // pred_fallthru
          _
        %v243 = vld [vmem:[#allocation2] sm:$0xff]
        %v244 = vld [vmem:[#allocation2 + $0x8] sm:$0xff]
        %v245 = vld [vmem:[#allocation2 + $0x10] sm:$0x3]
        %v246 = vld [vmem:[%s202] sm:$0xff]
        %v247 = vld [vmem:[%s202 + $0x8] sm:$0xff]
        %v248 = vld [vmem:[%s202 + $0x10] sm:$0x3]
        %v249 = vld [vmem:[%s211] sm:$0xff]
        %v250 = vld [vmem:[%s211 + $0x8] sm:$0x1]
        %v253 = vlaneseq
        %v254 = vshrl.u32 %v253, 7
        %v255 = vsub.s32 0, %v254
        %v256 = vrot.slane %v249, %v255
        %v257 = vlaneseq
        %v258 = vshrl.u32 %v257, 7
        %v259 = vsub.s32 1, %v258
        %v260 = vrot.slane %v249, %v259
        %v261 = vlaneseq
        %v262 = vshrl.u32 %v261, 7
        %v263 = vsub.s32 2, %v262
        %v264 = vrot.slane %v249, %v263
        %v265 = vlaneseq
        %v266 = vshrl.u32 %v265, 7
        %v267 = vsub.s32 3, %v266
        %v268 = vrot.slane %v249, %v267
        %v269 = vlaneseq
        %v270 = vshrl.u32 %v269, 7
        %v271 = vsub.s32 4, %v270
        %v272 = vrot.slane %v249, %v271
        %v273 = vlaneseq
        %v274 = vshrl.u32 %v273, 7
        %v275 = vsub.s32 5, %v274
        %v276 = vrot.slane %v249, %v275
        %v277 = vlaneseq
        %v278 = vshrl.u32 %v277, 7
        %v279 = vsub.s32 6, %v278
        %v280 = vrot.slane %v249, %v279
        %v281 = vlaneseq
        %v282 = vshrl.u32 %v281, 7
        %v283 = vsub.s32 7, %v282
        %v284 = vrot.slane %v249, %v283
        %v285 = vlaneseq
        %v286 = vshrl.u32 %v285, 7
        %v287 = vsub.s32 0, %v286
        %v288 = vrot.slane %v250, %v287
        %v289 = vcombine.low %v256, %v260
        %v290 = vcombine.low %v264, %v268
        %v292 = vunpack.c.l.s4 1983009808
        %v293 = vunpack.c.0.s8 %v292
        %v294 = vlaneseq
        %v295 = vshrl.u32 %v294, 7
        %v296 = vsub.s32 %v293, %v295
        %v297 = vrot.slane %v289, %v296
        %v299 = vunpack.c.l.s4 1983009808
        %v300 = vunpack.c.0.s8 %v299
        %v301 = vlaneseq
        %v302 = vshrl.u32 %v301, 7
        %v303 = vsub.s32 %v300, %v302
        %v304 = vrot.slane %v290, %v303
        %v305 = vcombine.low %v297, %v304
        %v306 = vcombine.low %v272, %v276
        %v307 = vcombine.low %v280, %v284
        %v309 = vunpack.c.l.s4 1983009808
        %v310 = vunpack.c.0.s8 %v309
        %v311 = vlaneseq
        %v312 = vshrl.u32 %v311, 7
        %v313 = vsub.s32 %v310, %v312
        %v314 = vrot.slane %v306, %v313
        %v316 = vunpack.c.l.s4 1983009808
        %v317 = vunpack.c.0.s8 %v316
        %v318 = vlaneseq
        %v319 = vshrl.u32 %v318, 7
        %v320 = vsub.s32 %v317, %v319
        %v321 = vrot.slane %v307, %v320
        %v322 = vcombine.low %v314, %v321
        %v324 = vunpack.c.l.s4 1983009808
        %v325 = vunpack.c.0.s8 %v324
        %v326 = vlaneseq
        %v327 = vshrl.u32 %v326, 7
        %v328 = vsub.s32 %v325, %v327
        %v329 = vrot.slane %v288, %v328
        %v333 = vmul.f32 %v246, %v305
        %v334 = vmul.f32 %v247, %v322
        %v335 = vmul.f32 %v248, %v329
        %v336 = vadd.f32 %v243, %v333
        %v337 = vadd.f32 %v244, %v334
        %v338 = vadd.f32 %v245, %v335
        %v339 = vld [vmem:[%s202 + $0x12] sm:$0xff]
        %v340 = vld [vmem:[%s202 + $0x1a] sm:$0xff]
        %v341 = vld [vmem:[%s202 + $0x22] sm:$0x3]
        %v342 = vld [vmem:[%s211 + $0x9] sm:$0xff]
        %v343 = vld [vmem:[%s211 + $0x11] sm:$0x1]
        %v346 = vlaneseq
        %v347 = vshrl.u32 %v346, 7
        %v348 = vsub.s32 0, %v347
        %v349 = vrot.slane %v342, %v348
        %v350 = vlaneseq
        %v351 = vshrl.u32 %v350, 7
        %v352 = vsub.s32 1, %v351
        %v353 = vrot.slane %v342, %v352
        %v354 = vlaneseq
        %v355 = vshrl.u32 %v354, 7
        %v356 = vsub.s32 2, %v355
        %v357 = vrot.slane %v342, %v356
        %v358 = vlaneseq
        %v359 = vshrl.u32 %v358, 7
        %v360 = vsub.s32 3, %v359
        %v361 = vrot.slane %v342, %v360
        %v362 = vlaneseq
        %v363 = vshrl.u32 %v362, 7
        %v364 = vsub.s32 4, %v363
        %v365 = vrot.slane %v342, %v364
        %v366 = vlaneseq
        %v367 = vshrl.u32 %v366, 7
        %v368 = vsub.s32 5, %v367
        %v369 = vrot.slane %v342, %v368
        %v370 = vlaneseq
        %v371 = vshrl.u32 %v370, 7
        %v372 = vsub.s32 6, %v371
        %v373 = vrot.slane %v342, %v372
        %v374 = vlaneseq
        %v375 = vshrl.u32 %v374, 7
        %v376 = vsub.s32 7, %v375
        %v377 = vrot.slane %v342, %v376
        %v378 = vlaneseq
        %v379 = vshrl.u32 %v378, 7
        %v380 = vsub.s32 0, %v379
        %v381 = vrot.slane %v343, %v380
        %v382 = vcombine.low %v349, %v353
        %v383 = vcombine.low %v357, %v361
        %v385 = vunpack.c.l.s4 1983009808
        %v386 = vunpack.c.0.s8 %v385
        %v387 = vlaneseq
        %v388 = vshrl.u32 %v387, 7
        %v389 = vsub.s32 %v386, %v388
        %v390 = vrot.slane %v382, %v389
        %v392 = vunpack.c.l.s4 1983009808
        %v393 = vunpack.c.0.s8 %v392
        %v394 = vlaneseq
        %v395 = vshrl.u32 %v394, 7
        %v396 = vsub.s32 %v393, %v395
        %v397 = vrot.slane %v383, %v396
        %v398 = vcombine.low %v390, %v397
        %v399 = vcombine.low %v365, %v369
        %v400 = vcombine.low %v373, %v377
        %v402 = vunpack.c.l.s4 1983009808
        %v403 = vunpack.c.0.s8 %v402
        %v404 = vlaneseq
        %v405 = vshrl.u32 %v404, 7
        %v406 = vsub.s32 %v403, %v405
        %v407 = vrot.slane %v399, %v406
        %v409 = vunpack.c.l.s4 1983009808
        %v410 = vunpack.c.0.s8 %v409
        %v411 = vlaneseq
        %v412 = vshrl.u32 %v411, 7
        %v413 = vsub.s32 %v410, %v412
        %v414 = vrot.slane %v400, %v413
        %v415 = vcombine.low %v407, %v414
        %v417 = vunpack.c.l.s4 1983009808
        %v418 = vunpack.c.0.s8 %v417
        %v419 = vlaneseq
        %v420 = vshrl.u32 %v419, 7
        %v421 = vsub.s32 %v418, %v420
        %v422 = vrot.slane %v381, %v421
        %v426 = vmul.f32 %v339, %v398
        %v427 = vmul.f32 %v340, %v415
        %v428 = vmul.f32 %v341, %v422
        %v429 = vadd.f32 %v336, %v426
        %v430 = vadd.f32 %v337, %v427
        %v431 = vadd.f32 %v338, %v428
        %v432 = vld [vmem:[%s202 + $0x24] sm:$0xff]
        %v433 = vld [vmem:[%s202 + $0x2c] sm:$0xff]
        %v434 = vld [vmem:[%s202 + $0x34] sm:$0x3]
        %v435 = vld [vmem:[%s211 + $0x12] sm:$0xff]
        %v436 = vld [vmem:[%s211 + $0x1a] sm:$0x1]
        %v439 = vlaneseq
        %v440 = vshrl.u32 %v439, 7
        %v441 = vsub.s32 0, %v440
        %v442 = vrot.slane %v435, %v441
        %v443 = vlaneseq
        %v444 = vshrl.u32 %v443, 7
        %v445 = vsub.s32 1, %v444
        %v446 = vrot.slane %v435, %v445
        %v447 = vlaneseq
        %v448 = vshrl.u32 %v447, 7
        %v449 = vsub.s32 2, %v448
        %v450 = vrot.slane %v435, %v449
        %v451 = vlaneseq
        %v452 = vshrl.u32 %v451, 7
        %v453 = vsub.s32 3, %v452
        %v454 = vrot.slane %v435, %v453
        %v455 = vlaneseq
        %v456 = vshrl.u32 %v455, 7
        %v457 = vsub.s32 4, %v456
        %v458 = vrot.slane %v435, %v457
        %v459 = vlaneseq
        %v460 = vshrl.u32 %v459, 7
        %v461 = vsub.s32 5, %v460
        %v462 = vrot.slane %v435, %v461
        %v463 = vlaneseq
        %v464 = vshrl.u32 %v463, 7
        %v465 = vsub.s32 6, %v464
        %v466 = vrot.slane %v435, %v465
        %v467 = vlaneseq
        %v468 = vshrl.u32 %v467, 7
        %v469 = vsub.s32 7, %v468
        %v470 = vrot.slane %v435, %v469
        %v471 = vlaneseq
        %v472 = vshrl.u32 %v471, 7
        %v473 = vsub.s32 0, %v472
        %v474 = vrot.slane %v436, %v473
        %v475 = vcombine.low %v442, %v446
        %v476 = vcombine.low %v450, %v454
        %v478 = vunpack.c.l.s4 1983009808
        %v479 = vunpack.c.0.s8 %v478
        %v480 = vlaneseq
        %v481 = vshrl.u32 %v480, 7
        %v482 = vsub.s32 %v479, %v481
        %v483 = vrot.slane %v475, %v482
        %v485 = vunpack.c.l.s4 1983009808
        %v486 = vunpack.c.0.s8 %v485
        %v487 = vlaneseq
        %v488 = vshrl.u32 %v487, 7
        %v489 = vsub.s32 %v486, %v488
        %v490 = vrot.slane %v476, %v489
        %v491 = vcombine.low %v483, %v490
        %v492 = vcombine.low %v458, %v462
        %v493 = vcombine.low %v466, %v470
        %v495 = vunpack.c.l.s4 1983009808
        %v496 = vunpack.c.0.s8 %v495
        %v497 = vlaneseq
        %v498 = vshrl.u32 %v497, 7
        %v499 = vsub.s32 %v496, %v498
        %v500 = vrot.slane %v492, %v499
        %v502 = vunpack.c.l.s4 1983009808
        %v503 = vunpack.c.0.s8 %v502
        %v504 = vlaneseq
        %v505 = vshrl.u32 %v504, 7
        %v506 = vsub.s32 %v503, %v505
        %v507 = vrot.slane %v493, %v506
        %v508 = vcombine.low %v500, %v507
        %v510 = vunpack.c.l.s4 1983009808
        %v511 = vunpack.c.0.s8 %v510
        %v512 = vlaneseq
        %v513 = vshrl.u32 %v512, 7
        %v514 = vsub.s32 %v511, %v513
        %v515 = vrot.slane %v474, %v514
        %v519 = vmul.f32 %v432, %v491
        %v520 = vmul.f32 %v433, %v508
        %v521 = vmul.f32 %v434, %v515
        %v522 = vadd.f32 %v429, %v519
        %v523 = vadd.f32 %v430, %v520
        %v524 = vadd.f32 %v431, %v521
        %v525 = vld [vmem:[%s202 + $0x36] sm:$0xff]
        %v526 = vld [vmem:[%s202 + $0x3e] sm:$0xff]
        %v527 = vld [vmem:[%s202 + $0x46] sm:$0x3]
        %v528 = vld [vmem:[%s211 + $0x1b] sm:$0xff]
        %v529 = vld [vmem:[%s211 + $0x23] sm:$0x1]
        %v532 = vlaneseq
        %v533 = vshrl.u32 %v532, 7
        %v534 = vsub.s32 0, %v533
        %v535 = vrot.slane %v528, %v534
        %v536 = vlaneseq
        %v537 = vshrl.u32 %v536, 7
        %v538 = vsub.s32 1, %v537
        %v539 = vrot.slane %v528, %v538
        %v540 = vlaneseq
        %v541 = vshrl.u32 %v540, 7
        %v542 = vsub.s32 2, %v541
        %v543 = vrot.slane %v528, %v542
        %v544 = vlaneseq
        %v545 = vshrl.u32 %v544, 7
        %v546 = vsub.s32 3, %v545
        %v547 = vrot.slane %v528, %v546
        %v548 = vlaneseq
        %v549 = vshrl.u32 %v548, 7
        %v550 = vsub.s32 4, %v549
        %v551 = vrot.slane %v528, %v550
        %v552 = vlaneseq
        %v553 = vshrl.u32 %v552, 7
        %v554 = vsub.s32 5, %v553
        %v555 = vrot.slane %v528, %v554
        %v556 = vlaneseq
        %v557 = vshrl.u32 %v556, 7
        %v558 = vsub.s32 6, %v557
        %v559 = vrot.slane %v528, %v558
        %v560 = vlaneseq
        %v561 = vshrl.u32 %v560, 7
        %v562 = vsub.s32 7, %v561
        %v563 = vrot.slane %v528, %v562
        %v564 = vlaneseq
        %v565 = vshrl.u32 %v564, 7
        %v566 = vsub.s32 0, %v565
        %v567 = vrot.slane %v529, %v566
        %v568 = vcombine.low %v535, %v539
        %v569 = vcombine.low %v543, %v547
        %v571 = vunpack.c.l.s4 1983009808
        %v572 = vunpack.c.0.s8 %v571
        %v573 = vlaneseq
        %v574 = vshrl.u32 %v573, 7
        %v575 = vsub.s32 %v572, %v574
        %v576 = vrot.slane %v568, %v575
        %v578 = vunpack.c.l.s4 1983009808
        %v579 = vunpack.c.0.s8 %v578
        %v580 = vlaneseq
        %v581 = vshrl.u32 %v580, 7
        %v582 = vsub.s32 %v579, %v581
        %v583 = vrot.slane %v569, %v582
        %v584 = vcombine.low %v576, %v583
        %v585 = vcombine.low %v551, %v555
        %v586 = vcombine.low %v559, %v563
        %v588 = vunpack.c.l.s4 1983009808
        %v589 = vunpack.c.0.s8 %v588
        %v590 = vlaneseq
        %v591 = vshrl.u32 %v590, 7
        %v592 = vsub.s32 %v589, %v591
        %v593 = vrot.slane %v585, %v592
        %v595 = vunpack.c.l.s4 1983009808
        %v596 = vunpack.c.0.s8 %v595
        %v597 = vlaneseq
        %v598 = vshrl.u32 %v597, 7
        %v599 = vsub.s32 %v596, %v598
        %v600 = vrot.slane %v586, %v599
        %v601 = vcombine.low %v593, %v600
        %v603 = vunpack.c.l.s4 1983009808
        %v604 = vunpack.c.0.s8 %v603
        %v605 = vlaneseq
        %v606 = vshrl.u32 %v605, 7
        %v607 = vsub.s32 %v604, %v606
        %v608 = vrot.slane %v567, %v607
        %v612 = vmul.f32 %v525, %v584
        %v613 = vmul.f32 %v526, %v601
        %v614 = vmul.f32 %v527, %v608
        %v615 = vadd.f32 %v522, %v612
        %v616 = vadd.f32 %v523, %v613
        %v617 = vadd.f32 %v524, %v614
        %v618 = vld [vmem:[%s202 + $0x48] sm:$0xff]
        %v619 = vld [vmem:[%s202 + $0x50] sm:$0xff]
        %v620 = vld [vmem:[%s202 + $0x58] sm:$0x3]
        %v621 = vld [vmem:[%s211 + $0x24] sm:$0xff]
        %v622 = vld [vmem:[%s211 + $0x2c] sm:$0x1]
        %v625 = vlaneseq
        %v626 = vshrl.u32 %v625, 7
        %v627 = vsub.s32 0, %v626
        %v628 = vrot.slane %v621, %v627
        %v629 = vlaneseq
        %v630 = vshrl.u32 %v629, 7
        %v631 = vsub.s32 1, %v630
        %v632 = vrot.slane %v621, %v631
        %v633 = vlaneseq
        %v634 = vshrl.u32 %v633, 7
        %v635 = vsub.s32 2, %v634
        %v636 = vrot.slane %v621, %v635
        %v637 = vlaneseq
        %v638 = vshrl.u32 %v637, 7
        %v639 = vsub.s32 3, %v638
        %v640 = vrot.slane %v621, %v639
        %v641 = vlaneseq
        %v642 = vshrl.u32 %v641, 7
        %v643 = vsub.s32 4, %v642
        %v644 = vrot.slane %v621, %v643
        %v645 = vlaneseq
        %v646 = vshrl.u32 %v645, 7
        %v647 = vsub.s32 5, %v646
        %v648 = vrot.slane %v621, %v647
        %v649 = vlaneseq
        %v650 = vshrl.u32 %v649, 7
        %v651 = vsub.s32 6, %v650
        %v652 = vrot.slane %v621, %v651
        %v653 = vlaneseq
        %v654 = vshrl.u32 %v653, 7
        %v655 = vsub.s32 7, %v654
        %v656 = vrot.slane %v621, %v655
        %v657 = vlaneseq
        %v658 = vshrl.u32 %v657, 7
        %v659 = vsub.s32 0, %v658
        %v660 = vrot.slane %v622, %v659
        %v661 = vcombine.low %v628, %v632
        %v662 = vcombine.low %v636, %v640
        %v664 = vunpack.c.l.s4 1983009808
        %v665 = vunpack.c.0.s8 %v664
        %v666 = vlaneseq
        %v667 = vshrl.u32 %v666, 7
        %v668 = vsub.s32 %v665, %v667
        %v669 = vrot.slane %v661, %v668
        %v671 = vunpack.c.l.s4 1983009808
        %v672 = vunpack.c.0.s8 %v671
        %v673 = vlaneseq
        %v674 = vshrl.u32 %v673, 7
        %v675 = vsub.s32 %v672, %v674
        %v676 = vrot.slane %v662, %v675
        %v677 = vcombine.low %v669, %v676
        %v678 = vcombine.low %v644, %v648
        %v679 = vcombine.low %v652, %v656
        %v681 = vunpack.c.l.s4 1983009808
        %v682 = vunpack.c.0.s8 %v681
        %v683 = vlaneseq
        %v684 = vshrl.u32 %v683, 7
        %v685 = vsub.s32 %v682, %v684
        %v686 = vrot.slane %v678, %v685
        %v688 = vunpack.c.l.s4 1983009808
        %v689 = vunpack.c.0.s8 %v688
        %v690 = vlaneseq
        %v691 = vshrl.u32 %v690, 7
        %v692 = vsub.s32 %v689, %v691
        %v693 = vrot.slane %v679, %v692
        %v694 = vcombine.low %v686, %v693
        %v696 = vunpack.c.l.s4 1983009808
        %v697 = vunpack.c.0.s8 %v696
        %v698 = vlaneseq
        %v699 = vshrl.u32 %v698, 7
        %v700 = vsub.s32 %v697, %v699
        %v701 = vrot.slane %v660, %v700
        %v705 = vmul.f32 %v618, %v677
        %v706 = vmul.f32 %v619, %v694
        %v707 = vmul.f32 %v620, %v701
        %v708 = vadd.f32 %v615, %v705
        %v709 = vadd.f32 %v616, %v706
        %v710 = vadd.f32 %v617, %v707
        %v711 = vld [vmem:[%s202 + $0x5a] sm:$0xff]
        %v712 = vld [vmem:[%s202 + $0x62] sm:$0xff]
        %v713 = vld [vmem:[%s202 + $0x6a] sm:$0x3]
        %v714 = vld [vmem:[%s211 + $0x2d] sm:$0xff]
        %v715 = vld [vmem:[%s211 + $0x35] sm:$0x1]
        %v718 = vlaneseq
        %v719 = vshrl.u32 %v718, 7
        %v720 = vsub.s32 0, %v719
        %v721 = vrot.slane %v714, %v720
        %v722 = vlaneseq
        %v723 = vshrl.u32 %v722, 7
        %v724 = vsub.s32 1, %v723
        %v725 = vrot.slane %v714, %v724
        %v726 = vlaneseq
        %v727 = vshrl.u32 %v726, 7
        %v728 = vsub.s32 2, %v727
        %v729 = vrot.slane %v714, %v728
        %v730 = vlaneseq
        %v731 = vshrl.u32 %v730, 7
        %v732 = vsub.s32 3, %v731
        %v733 = vrot.slane %v714, %v732
        %v734 = vlaneseq
        %v735 = vshrl.u32 %v734, 7
        %v736 = vsub.s32 4, %v735
        %v737 = vrot.slane %v714, %v736
        %v738 = vlaneseq
        %v739 = vshrl.u32 %v738, 7
        %v740 = vsub.s32 5, %v739
        %v741 = vrot.slane %v714, %v740
        %v742 = vlaneseq
        %v743 = vshrl.u32 %v742, 7
        %v744 = vsub.s32 6, %v743
        %v745 = vrot.slane %v714, %v744
        %v746 = vlaneseq
        %v747 = vshrl.u32 %v746, 7
        %v748 = vsub.s32 7, %v747
        %v749 = vrot.slane %v714, %v748
        %v750 = vlaneseq
        %v751 = vshrl.u32 %v750, 7
        %v752 = vsub.s32 0, %v751
        %v753 = vrot.slane %v715, %v752
        %v754 = vcombine.low %v721, %v725
        %v755 = vcombine.low %v729, %v733
        %v757 = vunpack.c.l.s4 1983009808
        %v758 = vunpack.c.0.s8 %v757
        %v759 = vlaneseq
        %v760 = vshrl.u32 %v759, 7
        %v761 = vsub.s32 %v758, %v760
        %v762 = vrot.slane %v754, %v761
        %v764 = vunpack.c.l.s4 1983009808
        %v765 = vunpack.c.0.s8 %v764
        %v766 = vlaneseq
        %v767 = vshrl.u32 %v766, 7
        %v768 = vsub.s32 %v765, %v767
        %v769 = vrot.slane %v755, %v768
        %v770 = vcombine.low %v762, %v769
        %v771 = vcombine.low %v737, %v741
        %v772 = vcombine.low %v745, %v749
        %v774 = vunpack.c.l.s4 1983009808
        %v775 = vunpack.c.0.s8 %v774
        %v776 = vlaneseq
        %v777 = vshrl.u32 %v776, 7
        %v778 = vsub.s32 %v775, %v777
        %v779 = vrot.slane %v771, %v778
        %v781 = vunpack.c.l.s4 1983009808
        %v782 = vunpack.c.0.s8 %v781
        %v783 = vlaneseq
        %v784 = vshrl.u32 %v783, 7
        %v785 = vsub.s32 %v782, %v784
        %v786 = vrot.slane %v772, %v785
        %v787 = vcombine.low %v779, %v786
        %v789 = vunpack.c.l.s4 1983009808
        %v790 = vunpack.c.0.s8 %v789
        %v791 = vlaneseq
        %v792 = vshrl.u32 %v791, 7
        %v793 = vsub.s32 %v790, %v792
        %v794 = vrot.slane %v753, %v793
        %v798 = vmul.f32 %v711, %v770
        %v799 = vmul.f32 %v712, %v787
        %v800 = vmul.f32 %v713, %v794
        %v801 = vadd.f32 %v708, %v798
        %v802 = vadd.f32 %v709, %v799
        %v803 = vadd.f32 %v710, %v800
        %v804 = vld [vmem:[%s202 + $0x6c] sm:$0xff]
        %v805 = vld [vmem:[%s202 + $0x74] sm:$0xff]
        %v806 = vld [vmem:[%s202 + $0x7c] sm:$0x3]
        %v807 = vld [vmem:[%s211 + $0x36] sm:$0xff]
        %v808 = vld [vmem:[%s211 + $0x3e] sm:$0x1]
        %v811 = vlaneseq
        %v812 = vshrl.u32 %v811, 7
        %v813 = vsub.s32 0, %v812
        %v814 = vrot.slane %v807, %v813
        %v815 = vlaneseq
        %v816 = vshrl.u32 %v815, 7
        %v817 = vsub.s32 1, %v816
        %v818 = vrot.slane %v807, %v817
        %v819 = vlaneseq
        %v820 = vshrl.u32 %v819, 7
        %v821 = vsub.s32 2, %v820
        %v822 = vrot.slane %v807, %v821
        %v823 = vlaneseq
        %v824 = vshrl.u32 %v823, 7
        %v825 = vsub.s32 3, %v824
        %v826 = vrot.slane %v807, %v825
        %v827 = vlaneseq
        %v828 = vshrl.u32 %v827, 7
        %v829 = vsub.s32 4, %v828
        %v830 = vrot.slane %v807, %v829
        %v831 = vlaneseq
        %v832 = vshrl.u32 %v831, 7
        %v833 = vsub.s32 5, %v832
        %v834 = vrot.slane %v807, %v833
        %v835 = vlaneseq
        %v836 = vshrl.u32 %v835, 7
        %v837 = vsub.s32 6, %v836
        %v838 = vrot.slane %v807, %v837
        %v839 = vlaneseq
        %v840 = vshrl.u32 %v839, 7
        %v841 = vsub.s32 7, %v840
        %v842 = vrot.slane %v807, %v841
        %v843 = vlaneseq
        %v844 = vshrl.u32 %v843, 7
        %v845 = vsub.s32 0, %v844
        %v846 = vrot.slane %v808, %v845
        %v847 = vcombine.low %v814, %v818
        %v848 = vcombine.low %v822, %v826
        %v850 = vunpack.c.l.s4 1983009808
        %v851 = vunpack.c.0.s8 %v850
        %v852 = vlaneseq
        %v853 = vshrl.u32 %v852, 7
        %v854 = vsub.s32 %v851, %v853
        %v855 = vrot.slane %v847, %v854
        %v857 = vunpack.c.l.s4 1983009808
        %v858 = vunpack.c.0.s8 %v857
        %v859 = vlaneseq
        %v860 = vshrl.u32 %v859, 7
        %v861 = vsub.s32 %v858, %v860
        %v862 = vrot.slane %v848, %v861
        %v863 = vcombine.low %v855, %v862
        %v864 = vcombine.low %v830, %v834
        %v865 = vcombine.low %v838, %v842
        %v867 = vunpack.c.l.s4 1983009808
        %v868 = vunpack.c.0.s8 %v867
        %v869 = vlaneseq
        %v870 = vshrl.u32 %v869, 7
        %v871 = vsub.s32 %v868, %v870
        %v872 = vrot.slane %v864, %v871
        %v874 = vunpack.c.l.s4 1983009808
        %v875 = vunpack.c.0.s8 %v874
        %v876 = vlaneseq
        %v877 = vshrl.u32 %v876, 7
        %v878 = vsub.s32 %v875, %v877
        %v879 = vrot.slane %v865, %v878
        %v880 = vcombine.low %v872, %v879
        %v882 = vunpack.c.l.s4 1983009808
        %v883 = vunpack.c.0.s8 %v882
        %v884 = vlaneseq
        %v885 = vshrl.u32 %v884, 7
        %v886 = vsub.s32 %v883, %v885
        %v887 = vrot.slane %v846, %v886
        %v891 = vmul.f32 %v804, %v863
        %v892 = vmul.f32 %v805, %v880
        %v893 = vmul.f32 %v806, %v887
        %v894 = vadd.f32 %v801, %v891
        %v895 = vadd.f32 %v802, %v892
        %v896 = vadd.f32 %v803, %v893
        %v897 = vld [vmem:[%s202 + $0x7e] sm:$0xff]
        %v898 = vld [vmem:[%s202 + $0x86] sm:$0xff]
        %v899 = vld [vmem:[%s202 + $0x8e] sm:$0x3]
        %v900 = vld [vmem:[%s211 + $0x3f] sm:$0xff]
        %v901 = vld [vmem:[%s211 + $0x47] sm:$0x1]
        %v904 = vlaneseq
        %v905 = vshrl.u32 %v904, 7
        %v906 = vsub.s32 0, %v905
        %v907 = vrot.slane %v900, %v906
        %v908 = vlaneseq
        %v909 = vshrl.u32 %v908, 7
        %v910 = vsub.s32 1, %v909
        %v911 = vrot.slane %v900, %v910
        %v912 = vlaneseq
        %v913 = vshrl.u32 %v912, 7
        %v914 = vsub.s32 2, %v913
        %v915 = vrot.slane %v900, %v914
        %v916 = vlaneseq
        %v917 = vshrl.u32 %v916, 7
        %v918 = vsub.s32 3, %v917
        %v919 = vrot.slane %v900, %v918
        %v920 = vlaneseq
        %v921 = vshrl.u32 %v920, 7
        %v922 = vsub.s32 4, %v921
        %v923 = vrot.slane %v900, %v922
        %v924 = vlaneseq
        %v925 = vshrl.u32 %v924, 7
        %v926 = vsub.s32 5, %v925
        %v927 = vrot.slane %v900, %v926
        %v928 = vlaneseq
        %v929 = vshrl.u32 %v928, 7
        %v930 = vsub.s32 6, %v929
        %v931 = vrot.slane %v900, %v930
        %v932 = vlaneseq
        %v933 = vshrl.u32 %v932, 7
        %v934 = vsub.s32 7, %v933
        %v935 = vrot.slane %v900, %v934
        %v936 = vlaneseq
        %v937 = vshrl.u32 %v936, 7
        %v938 = vsub.s32 0, %v937
        %v939 = vrot.slane %v901, %v938
        %v940 = vcombine.low %v907, %v911
        %v941 = vcombine.low %v915, %v919
        %v943 = vunpack.c.l.s4 1983009808
        %v944 = vunpack.c.0.s8 %v943
        %v945 = vlaneseq
        %v946 = vshrl.u32 %v945, 7
        %v947 = vsub.s32 %v944, %v946
        %v948 = vrot.slane %v940, %v947
        %v950 = vunpack.c.l.s4 1983009808
        %v951 = vunpack.c.0.s8 %v950
        %v952 = vlaneseq
        %v953 = vshrl.u32 %v952, 7
        %v954 = vsub.s32 %v951, %v953
        %v955 = vrot.slane %v941, %v954
        %v956 = vcombine.low %v948, %v955
        %v957 = vcombine.low %v923, %v927
        %v958 = vcombine.low %v931, %v935
        %v960 = vunpack.c.l.s4 1983009808
        %v961 = vunpack.c.0.s8 %v960
        %v962 = vlaneseq
        %v963 = vshrl.u32 %v962, 7
        %v964 = vsub.s32 %v961, %v963
        %v965 = vrot.slane %v957, %v964
        %v967 = vunpack.c.l.s4 1983009808
        %v968 = vunpack.c.0.s8 %v967
        %v969 = vlaneseq
        %v970 = vshrl.u32 %v969, 7
        %v971 = vsub.s32 %v968, %v970
        %v972 = vrot.slane %v958, %v971
        %v973 = vcombine.low %v965, %v972
        %v975 = vunpack.c.l.s4 1983009808
        %v976 = vunpack.c.0.s8 %v975
        %v977 = vlaneseq
        %v978 = vshrl.u32 %v977, 7
        %v979 = vsub.s32 %v976, %v978
        %v980 = vrot.slane %v939, %v979
        %v984 = vmul.f32 %v897, %v956
        %v985 = vmul.f32 %v898, %v973
        %v986 = vmul.f32 %v899, %v980
        %v987 = vadd.f32 %v894, %v984
        %v988 = vadd.f32 %v895, %v985
        %v989 = vadd.f32 %v896, %v986
        %v990 = vld [vmem:[%s202 + $0x90] sm:$0xff]
        %v991 = vld [vmem:[%s202 + $0x98] sm:$0xff]
        %v992 = vld [vmem:[%s202 + $0xa0] sm:$0x3]
        %v993 = vld [vmem:[%s211 + $0x48] sm:$0xff]
        %v994 = vld [vmem:[%s211 + $0x50] sm:$0x1]
        %v997 = vlaneseq
        %v998 = vshrl.u32 %v997, 7
        %v999 = vsub.s32 0, %v998
        %v1000 = vrot.slane %v993, %v999
        %v1001 = vlaneseq
        %v1002 = vshrl.u32 %v1001, 7
        %v1003 = vsub.s32 1, %v1002
        %v1004 = vrot.slane %v993, %v1003
        %v1005 = vlaneseq
        %v1006 = vshrl.u32 %v1005, 7
        %v1007 = vsub.s32 2, %v1006
        %v1008 = vrot.slane %v993, %v1007
        %v1009 = vlaneseq
        %v1010 = vshrl.u32 %v1009, 7
        %v1011 = vsub.s32 3, %v1010
        %v1012 = vrot.slane %v993, %v1011
        %v1013 = vlaneseq
        %v1014 = vshrl.u32 %v1013, 7
        %v1015 = vsub.s32 4, %v1014
        %v1016 = vrot.slane %v993, %v1015
        %v1017 = vlaneseq
        %v1018 = vshrl.u32 %v1017, 7
        %v1019 = vsub.s32 5, %v1018
        %v1020 = vrot.slane %v993, %v1019
        %v1021 = vlaneseq
        %v1022 = vshrl.u32 %v1021, 7
        %v1023 = vsub.s32 6, %v1022
        %v1024 = vrot.slane %v993, %v1023
        %v1025 = vlaneseq
        %v1026 = vshrl.u32 %v1025, 7
        %v1027 = vsub.s32 7, %v1026
        %v1028 = vrot.slane %v993, %v1027
        %v1029 = vlaneseq
        %v1030 = vshrl.u32 %v1029, 7
        %v1031 = vsub.s32 0, %v1030
        %v1032 = vrot.slane %v994, %v1031
        %v1033 = vcombine.low %v1000, %v1004
        %v1034 = vcombine.low %v1008, %v1012
        %v1036 = vunpack.c.l.s4 1983009808
        %v1037 = vunpack.c.0.s8 %v1036
        %v1038 = vlaneseq
        %v1039 = vshrl.u32 %v1038, 7
        %v1040 = vsub.s32 %v1037, %v1039
        %v1041 = vrot.slane %v1033, %v1040
        %v1043 = vunpack.c.l.s4 1983009808
        %v1044 = vunpack.c.0.s8 %v1043
        %v1045 = vlaneseq
        %v1046 = vshrl.u32 %v1045, 7
        %v1047 = vsub.s32 %v1044, %v1046
        %v1048 = vrot.slane %v1034, %v1047
        %v1049 = vcombine.low %v1041, %v1048
        %v1050 = vcombine.low %v1016, %v1020
        %v1051 = vcombine.low %v1024, %v1028
        %v1053 = vunpack.c.l.s4 1983009808
        %v1054 = vunpack.c.0.s8 %v1053
        %v1055 = vlaneseq
        %v1056 = vshrl.u32 %v1055, 7
        %v1057 = vsub.s32 %v1054, %v1056
        %v1058 = vrot.slane %v1050, %v1057
        %v1060 = vunpack.c.l.s4 1983009808
        %v1061 = vunpack.c.0.s8 %v1060
        %v1062 = vlaneseq
        %v1063 = vshrl.u32 %v1062, 7
        %v1064 = vsub.s32 %v1061, %v1063
        %v1065 = vrot.slane %v1051, %v1064
        %v1066 = vcombine.low %v1058, %v1065
        %v1068 = vunpack.c.l.s4 1983009808
        %v1069 = vunpack.c.0.s8 %v1068
        %v1070 = vlaneseq
        %v1071 = vshrl.u32 %v1070, 7
        %v1072 = vsub.s32 %v1069, %v1071
        %v1073 = vrot.slane %v1032, %v1072
        %v1077 = vmul.f32 %v990, %v1049
        %v1078 = vmul.f32 %v991, %v1066
        %v1079 = vmul.f32 %v992, %v1073
        %v1080 = vadd.f32 %v987, %v1077
        %v1081 = vadd.f32 %v988, %v1078
        %v1082 = vadd.f32 %v989, %v1079
        %v1083 = vld [vmem:[%s202 + $0xa2] sm:$0xff]
        %v1084 = vld [vmem:[%s202 + $0xaa] sm:$0xff]
        %v1085 = vld [vmem:[%s202 + $0xb2] sm:$0x3]
        %v1086 = vld [vmem:[%s211 + $0x51] sm:$0xff]
        %v1087 = vld [vmem:[%s211 + $0x59] sm:$0x1]
        %v1090 = vlaneseq
        %v1091 = vshrl.u32 %v1090, 7
        %v1092 = vsub.s32 0, %v1091
        %v1093 = vrot.slane %v1086, %v1092
        %v1094 = vlaneseq
        %v1095 = vshrl.u32 %v1094, 7
        %v1096 = vsub.s32 1, %v1095
        %v1097 = vrot.slane %v1086, %v1096
        %v1098 = vlaneseq
        %v1099 = vshrl.u32 %v1098, 7
        %v1100 = vsub.s32 2, %v1099
        %v1101 = vrot.slane %v1086, %v1100
        %v1102 = vlaneseq
        %v1103 = vshrl.u32 %v1102, 7
        %v1104 = vsub.s32 3, %v1103
        %v1105 = vrot.slane %v1086, %v1104
        %v1106 = vlaneseq
        %v1107 = vshrl.u32 %v1106, 7
        %v1108 = vsub.s32 4, %v1107
        %v1109 = vrot.slane %v1086, %v1108
        %v1110 = vlaneseq
        %v1111 = vshrl.u32 %v1110, 7
        %v1112 = vsub.s32 5, %v1111
        %v1113 = vrot.slane %v1086, %v1112
        %v1114 = vlaneseq
        %v1115 = vshrl.u32 %v1114, 7
        %v1116 = vsub.s32 6, %v1115
        %v1117 = vrot.slane %v1086, %v1116
        %v1118 = vlaneseq
        %v1119 = vshrl.u32 %v1118, 7
        %v1120 = vsub.s32 7, %v1119
        %v1121 = vrot.slane %v1086, %v1120
        %v1122 = vlaneseq
        %v1123 = vshrl.u32 %v1122, 7
        %v1124 = vsub.s32 0, %v1123
        %v1125 = vrot.slane %v1087, %v1124
        %v1126 = vcombine.low %v1093, %v1097
        %v1127 = vcombine.low %v1101, %v1105
        %v1129 = vunpack.c.l.s4 1983009808
        %v1130 = vunpack.c.0.s8 %v1129
        %v1131 = vlaneseq
        %v1132 = vshrl.u32 %v1131, 7
        %v1133 = vsub.s32 %v1130, %v1132
        %v1134 = vrot.slane %v1126, %v1133
        %v1136 = vunpack.c.l.s4 1983009808
        %v1137 = vunpack.c.0.s8 %v1136
        %v1138 = vlaneseq
        %v1139 = vshrl.u32 %v1138, 7
        %v1140 = vsub.s32 %v1137, %v1139
        %v1141 = vrot.slane %v1127, %v1140
        %v1142 = vcombine.low %v1134, %v1141
        %v1143 = vcombine.low %v1109, %v1113
        %v1144 = vcombine.low %v1117, %v1121
        %v1146 = vunpack.c.l.s4 1983009808
        %v1147 = vunpack.c.0.s8 %v1146
        %v1148 = vlaneseq
        %v1149 = vshrl.u32 %v1148, 7
        %v1150 = vsub.s32 %v1147, %v1149
        %v1151 = vrot.slane %v1143, %v1150
        %v1153 = vunpack.c.l.s4 1983009808
        %v1154 = vunpack.c.0.s8 %v1153
        %v1155 = vlaneseq
        %v1156 = vshrl.u32 %v1155, 7
        %v1157 = vsub.s32 %v1154, %v1156
        %v1158 = vrot.slane %v1144, %v1157
        %v1159 = vcombine.low %v1151, %v1158
        %v1161 = vunpack.c.l.s4 1983009808
        %v1162 = vunpack.c.0.s8 %v1161
        %v1163 = vlaneseq
        %v1164 = vshrl.u32 %v1163, 7
        %v1165 = vsub.s32 %v1162, %v1164
        %v1166 = vrot.slane %v1125, %v1165
        %v1170 = vmul.f32 %v1083, %v1142
        %v1171 = vmul.f32 %v1084, %v1159
        %v1172 = vmul.f32 %v1085, %v1166
        %v1173 = vadd.f32 %v1080, %v1170
        %v1174 = vadd.f32 %v1081, %v1171
        %v1175 = vadd.f32 %v1082, %v1172
        %v1176 = vld [vmem:[%s202 + $0xb4] sm:$0xff]
        %v1177 = vld [vmem:[%s202 + $0xbc] sm:$0xff]
        %v1178 = vld [vmem:[%s202 + $0xc4] sm:$0x3]
        %v1179 = vld [vmem:[%s211 + $0x5a] sm:$0xff]
        %v1180 = vld [vmem:[%s211 + $0x62] sm:$0x1]
        %v1183 = vlaneseq
        %v1184 = vshrl.u32 %v1183, 7
        %v1185 = vsub.s32 0, %v1184
        %v1186 = vrot.slane %v1179, %v1185
        %v1187 = vlaneseq
        %v1188 = vshrl.u32 %v1187, 7
        %v1189 = vsub.s32 1, %v1188
        %v1190 = vrot.slane %v1179, %v1189
        %v1191 = vlaneseq
        %v1192 = vshrl.u32 %v1191, 7
        %v1193 = vsub.s32 2, %v1192
        %v1194 = vrot.slane %v1179, %v1193
        %v1195 = vlaneseq
        %v1196 = vshrl.u32 %v1195, 7
        %v1197 = vsub.s32 3, %v1196
        %v1198 = vrot.slane %v1179, %v1197
        %v1199 = vlaneseq
        %v1200 = vshrl.u32 %v1199, 7
        %v1201 = vsub.s32 4, %v1200
        %v1202 = vrot.slane %v1179, %v1201
        %v1203 = vlaneseq
        %v1204 = vshrl.u32 %v1203, 7
        %v1205 = vsub.s32 5, %v1204
        %v1206 = vrot.slane %v1179, %v1205
        %v1207 = vlaneseq
        %v1208 = vshrl.u32 %v1207, 7
        %v1209 = vsub.s32 6, %v1208
        %v1210 = vrot.slane %v1179, %v1209
        %v1211 = vlaneseq
        %v1212 = vshrl.u32 %v1211, 7
        %v1213 = vsub.s32 7, %v1212
        %v1214 = vrot.slane %v1179, %v1213
        %v1215 = vlaneseq
        %v1216 = vshrl.u32 %v1215, 7
        %v1217 = vsub.s32 0, %v1216
        %v1218 = vrot.slane %v1180, %v1217
        %v1219 = vcombine.low %v1186, %v1190
        %v1220 = vcombine.low %v1194, %v1198
        %v1222 = vunpack.c.l.s4 1983009808
        %v1223 = vunpack.c.0.s8 %v1222
        %v1224 = vlaneseq
        %v1225 = vshrl.u32 %v1224, 7
        %v1226 = vsub.s32 %v1223, %v1225
        %v1227 = vrot.slane %v1219, %v1226
        %v1229 = vunpack.c.l.s4 1983009808
        %v1230 = vunpack.c.0.s8 %v1229
        %v1231 = vlaneseq
        %v1232 = vshrl.u32 %v1231, 7
        %v1233 = vsub.s32 %v1230, %v1232
        %v1234 = vrot.slane %v1220, %v1233
        %v1235 = vcombine.low %v1227, %v1234
        %v1236 = vcombine.low %v1202, %v1206
        %v1237 = vcombine.low %v1210, %v1214
        %v1239 = vunpack.c.l.s4 1983009808
        %v1240 = vunpack.c.0.s8 %v1239
        %v1241 = vlaneseq
        %v1242 = vshrl.u32 %v1241, 7
        %v1243 = vsub.s32 %v1240, %v1242
        %v1244 = vrot.slane %v1236, %v1243
        %v1246 = vunpack.c.l.s4 1983009808
        %v1247 = vunpack.c.0.s8 %v1246
        %v1248 = vlaneseq
        %v1249 = vshrl.u32 %v1248, 7
        %v1250 = vsub.s32 %v1247, %v1249
        %v1251 = vrot.slane %v1237, %v1250
        %v1252 = vcombine.low %v1244, %v1251
        %v1254 = vunpack.c.l.s4 1983009808
        %v1255 = vunpack.c.0.s8 %v1254
        %v1256 = vlaneseq
        %v1257 = vshrl.u32 %v1256, 7
        %v1258 = vsub.s32 %v1255, %v1257
        %v1259 = vrot.slane %v1218, %v1258
        %v1263 = vmul.f32 %v1176, %v1235
        %v1264 = vmul.f32 %v1177, %v1252
        %v1265 = vmul.f32 %v1178, %v1259
        %v1266 = vadd.f32 %v1173, %v1263
        %v1267 = vadd.f32 %v1174, %v1264
        %v1268 = vadd.f32 %v1175, %v1265
        %v1269 = vld [vmem:[%s202 + $0xc6] sm:$0xff]
        %v1270 = vld [vmem:[%s202 + $0xce] sm:$0xff]
        %v1271 = vld [vmem:[%s202 + $0xd6] sm:$0x3]
        %v1272 = vld [vmem:[%s211 + $0x63] sm:$0xff]
        %v1273 = vld [vmem:[%s211 + $0x6b] sm:$0x1]
        %v1276 = vlaneseq
        %v1277 = vshrl.u32 %v1276, 7
        %v1278 = vsub.s32 0, %v1277
        %v1279 = vrot.slane %v1272, %v1278
        %v1280 = vlaneseq
        %v1281 = vshrl.u32 %v1280, 7
        %v1282 = vsub.s32 1, %v1281
        %v1283 = vrot.slane %v1272, %v1282
        %v1284 = vlaneseq
        %v1285 = vshrl.u32 %v1284, 7
        %v1286 = vsub.s32 2, %v1285
        %v1287 = vrot.slane %v1272, %v1286
        %v1288 = vlaneseq
        %v1289 = vshrl.u32 %v1288, 7
        %v1290 = vsub.s32 3, %v1289
        %v1291 = vrot.slane %v1272, %v1290
        %v1292 = vlaneseq
        %v1293 = vshrl.u32 %v1292, 7
        %v1294 = vsub.s32 4, %v1293
        %v1295 = vrot.slane %v1272, %v1294
        %v1296 = vlaneseq
        %v1297 = vshrl.u32 %v1296, 7
        %v1298 = vsub.s32 5, %v1297
        %v1299 = vrot.slane %v1272, %v1298
        %v1300 = vlaneseq
        %v1301 = vshrl.u32 %v1300, 7
        %v1302 = vsub.s32 6, %v1301
        %v1303 = vrot.slane %v1272, %v1302
        %v1304 = vlaneseq
        %v1305 = vshrl.u32 %v1304, 7
        %v1306 = vsub.s32 7, %v1305
        %v1307 = vrot.slane %v1272, %v1306
        %v1308 = vlaneseq
        %v1309 = vshrl.u32 %v1308, 7
        %v1310 = vsub.s32 0, %v1309
        %v1311 = vrot.slane %v1273, %v1310
        %v1312 = vcombine.low %v1279, %v1283
        %v1313 = vcombine.low %v1287, %v1291
        %v1315 = vunpack.c.l.s4 1983009808
        %v1316 = vunpack.c.0.s8 %v1315
        %v1317 = vlaneseq
        %v1318 = vshrl.u32 %v1317, 7
        %v1319 = vsub.s32 %v1316, %v1318
        %v1320 = vrot.slane %v1312, %v1319
        %v1322 = vunpack.c.l.s4 1983009808
        %v1323 = vunpack.c.0.s8 %v1322
        %v1324 = vlaneseq
        %v1325 = vshrl.u32 %v1324, 7
        %v1326 = vsub.s32 %v1323, %v1325
        %v1327 = vrot.slane %v1313, %v1326
        %v1328 = vcombine.low %v1320, %v1327
        %v1329 = vcombine.low %v1295, %v1299
        %v1330 = vcombine.low %v1303, %v1307
        %v1332 = vunpack.c.l.s4 1983009808
        %v1333 = vunpack.c.0.s8 %v1332
        %v1334 = vlaneseq
        %v1335 = vshrl.u32 %v1334, 7
        %v1336 = vsub.s32 %v1333, %v1335
        %v1337 = vrot.slane %v1329, %v1336
        %v1339 = vunpack.c.l.s4 1983009808
        %v1340 = vunpack.c.0.s8 %v1339
        %v1341 = vlaneseq
        %v1342 = vshrl.u32 %v1341, 7
        %v1343 = vsub.s32 %v1340, %v1342
        %v1344 = vrot.slane %v1330, %v1343
        %v1345 = vcombine.low %v1337, %v1344
        %v1347 = vunpack.c.l.s4 1983009808
        %v1348 = vunpack.c.0.s8 %v1347
        %v1349 = vlaneseq
        %v1350 = vshrl.u32 %v1349, 7
        %v1351 = vsub.s32 %v1348, %v1350
        %v1352 = vrot.slane %v1311, %v1351
        %v1356 = vmul.f32 %v1269, %v1328
        %v1357 = vmul.f32 %v1270, %v1345
        %v1358 = vmul.f32 %v1271, %v1352
        %v1359 = vadd.f32 %v1266, %v1356
        %v1360 = vadd.f32 %v1267, %v1357
        %v1361 = vadd.f32 %v1268, %v1358
        %v1362 = vld [vmem:[%s202 + $0xd8] sm:$0xff]
        %v1363 = vld [vmem:[%s202 + $0xe0] sm:$0xff]
        %v1364 = vld [vmem:[%s202 + $0xe8] sm:$0x3]
        %v1365 = vld [vmem:[%s211 + $0x6c] sm:$0xff]
        %v1366 = vld [vmem:[%s211 + $0x74] sm:$0x1]
        %v1369 = vlaneseq
        %v1370 = vshrl.u32 %v1369, 7
        %v1371 = vsub.s32 0, %v1370
        %v1372 = vrot.slane %v1365, %v1371
        %v1373 = vlaneseq
        %v1374 = vshrl.u32 %v1373, 7
        %v1375 = vsub.s32 1, %v1374
        %v1376 = vrot.slane %v1365, %v1375
        %v1377 = vlaneseq
        %v1378 = vshrl.u32 %v1377, 7
        %v1379 = vsub.s32 2, %v1378
        %v1380 = vrot.slane %v1365, %v1379
        %v1381 = vlaneseq
        %v1382 = vshrl.u32 %v1381, 7
        %v1383 = vsub.s32 3, %v1382
        %v1384 = vrot.slane %v1365, %v1383
        %v1385 = vlaneseq
        %v1386 = vshrl.u32 %v1385, 7
        %v1387 = vsub.s32 4, %v1386
        %v1388 = vrot.slane %v1365, %v1387
        %v1389 = vlaneseq
        %v1390 = vshrl.u32 %v1389, 7
        %v1391 = vsub.s32 5, %v1390
        %v1392 = vrot.slane %v1365, %v1391
        %v1393 = vlaneseq
        %v1394 = vshrl.u32 %v1393, 7
        %v1395 = vsub.s32 6, %v1394
        %v1396 = vrot.slane %v1365, %v1395
        %v1397 = vlaneseq
        %v1398 = vshrl.u32 %v1397, 7
        %v1399 = vsub.s32 7, %v1398
        %v1400 = vrot.slane %v1365, %v1399
        %v1401 = vlaneseq
        %v1402 = vshrl.u32 %v1401, 7
        %v1403 = vsub.s32 0, %v1402
        %v1404 = vrot.slane %v1366, %v1403
        %v1405 = vcombine.low %v1372, %v1376
        %v1406 = vcombine.low %v1380, %v1384
        %v1408 = vunpack.c.l.s4 1983009808
        %v1409 = vunpack.c.0.s8 %v1408
        %v1410 = vlaneseq
        %v1411 = vshrl.u32 %v1410, 7
        %v1412 = vsub.s32 %v1409, %v1411
        %v1413 = vrot.slane %v1405, %v1412
        %v1415 = vunpack.c.l.s4 1983009808
        %v1416 = vunpack.c.0.s8 %v1415
        %v1417 = vlaneseq
        %v1418 = vshrl.u32 %v1417, 7
        %v1419 = vsub.s32 %v1416, %v1418
        %v1420 = vrot.slane %v1406, %v1419
        %v1421 = vcombine.low %v1413, %v1420
        %v1422 = vcombine.low %v1388, %v1392
        %v1423 = vcombine.low %v1396, %v1400
        %v1425 = vunpack.c.l.s4 1983009808
        %v1426 = vunpack.c.0.s8 %v1425
        %v1427 = vlaneseq
        %v1428 = vshrl.u32 %v1427, 7
        %v1429 = vsub.s32 %v1426, %v1428
        %v1430 = vrot.slane %v1422, %v1429
        %v1432 = vunpack.c.l.s4 1983009808
        %v1433 = vunpack.c.0.s8 %v1432
        %v1434 = vlaneseq
        %v1435 = vshrl.u32 %v1434, 7
        %v1436 = vsub.s32 %v1433, %v1435
        %v1437 = vrot.slane %v1423, %v1436
        %v1438 = vcombine.low %v1430, %v1437
        %v1440 = vunpack.c.l.s4 1983009808
        %v1441 = vunpack.c.0.s8 %v1440
        %v1442 = vlaneseq
        %v1443 = vshrl.u32 %v1442, 7
        %v1444 = vsub.s32 %v1441, %v1443
        %v1445 = vrot.slane %v1404, %v1444
        %v1449 = vmul.f32 %v1362, %v1421
        %v1450 = vmul.f32 %v1363, %v1438
        %v1451 = vmul.f32 %v1364, %v1445
        %v1452 = vadd.f32 %v1359, %v1449
        %v1453 = vadd.f32 %v1360, %v1450
        %v1454 = vadd.f32 %v1361, %v1451
        %v1455 = vld [vmem:[%s202 + $0xea] sm:$0xff]
        %v1456 = vld [vmem:[%s202 + $0xf2] sm:$0xff]
        %v1457 = vld [vmem:[%s202 + $0xfa] sm:$0x3]
        %v1458 = vld [vmem:[%s211 + $0x75] sm:$0xff]
        %v1459 = vld [vmem:[%s211 + $0x7d] sm:$0x1]
        %v1462 = vlaneseq
        %v1463 = vshrl.u32 %v1462, 7
        %v1464 = vsub.s32 0, %v1463
        %v1465 = vrot.slane %v1458, %v1464
        %v1466 = vlaneseq
        %v1467 = vshrl.u32 %v1466, 7
        %v1468 = vsub.s32 1, %v1467
        %v1469 = vrot.slane %v1458, %v1468
        %v1470 = vlaneseq
        %v1471 = vshrl.u32 %v1470, 7
        %v1472 = vsub.s32 2, %v1471
        %v1473 = vrot.slane %v1458, %v1472
        %v1474 = vlaneseq
        %v1475 = vshrl.u32 %v1474, 7
        %v1476 = vsub.s32 3, %v1475
        %v1477 = vrot.slane %v1458, %v1476
        %v1478 = vlaneseq
        %v1479 = vshrl.u32 %v1478, 7
        %v1480 = vsub.s32 4, %v1479
        %v1481 = vrot.slane %v1458, %v1480
        %v1482 = vlaneseq
        %v1483 = vshrl.u32 %v1482, 7
        %v1484 = vsub.s32 5, %v1483
        %v1485 = vrot.slane %v1458, %v1484
        %v1486 = vlaneseq
        %v1487 = vshrl.u32 %v1486, 7
        %v1488 = vsub.s32 6, %v1487
        %v1489 = vrot.slane %v1458, %v1488
        %v1490 = vlaneseq
        %v1491 = vshrl.u32 %v1490, 7
        %v1492 = vsub.s32 7, %v1491
        %v1493 = vrot.slane %v1458, %v1492
        %v1494 = vlaneseq
        %v1495 = vshrl.u32 %v1494, 7
        %v1496 = vsub.s32 0, %v1495
        %v1497 = vrot.slane %v1459, %v1496
        %v1498 = vcombine.low %v1465, %v1469
        %v1499 = vcombine.low %v1473, %v1477
        %v1501 = vunpack.c.l.s4 1983009808
        %v1502 = vunpack.c.0.s8 %v1501
        %v1503 = vlaneseq
        %v1504 = vshrl.u32 %v1503, 7
        %v1505 = vsub.s32 %v1502, %v1504
        %v1506 = vrot.slane %v1498, %v1505
        %v1508 = vunpack.c.l.s4 1983009808
        %v1509 = vunpack.c.0.s8 %v1508
        %v1510 = vlaneseq
        %v1511 = vshrl.u32 %v1510, 7
        %v1512 = vsub.s32 %v1509, %v1511
        %v1513 = vrot.slane %v1499, %v1512
        %v1514 = vcombine.low %v1506, %v1513
        %v1515 = vcombine.low %v1481, %v1485
        %v1516 = vcombine.low %v1489, %v1493
        %v1518 = vunpack.c.l.s4 1983009808
        %v1519 = vunpack.c.0.s8 %v1518
        %v1520 = vlaneseq
        %v1521 = vshrl.u32 %v1520, 7
        %v1522 = vsub.s32 %v1519, %v1521
        %v1523 = vrot.slane %v1515, %v1522
        %v1525 = vunpack.c.l.s4 1983009808
        %v1526 = vunpack.c.0.s8 %v1525
        %v1527 = vlaneseq
        %v1528 = vshrl.u32 %v1527, 7
        %v1529 = vsub.s32 %v1526, %v1528
        %v1530 = vrot.slane %v1516, %v1529
        %v1531 = vcombine.low %v1523, %v1530
        %v1533 = vunpack.c.l.s4 1983009808
        %v1534 = vunpack.c.0.s8 %v1533
        %v1535 = vlaneseq
        %v1536 = vshrl.u32 %v1535, 7
        %v1537 = vsub.s32 %v1534, %v1536
        %v1538 = vrot.slane %v1497, %v1537
        %v1542 = vmul.f32 %v1455, %v1514
        %v1543 = vmul.f32 %v1456, %v1531
        %v1544 = vmul.f32 %v1457, %v1538
        %v1545 = vadd.f32 %v1452, %v1542
        %v1546 = vadd.f32 %v1453, %v1543
        %v1547 = vadd.f32 %v1454, %v1544
        %v1548 = vld [vmem:[%s202 + $0xfc] sm:$0xff]
        %v1549 = vld [vmem:[%s202 + $0x104] sm:$0xff]
        %v1550 = vld [vmem:[%s202 + $0x10c] sm:$0x3]
        %v1551 = vld [vmem:[%s211 + $0x7e] sm:$0xff]
        %v1552 = vld [vmem:[%s211 + $0x86] sm:$0x1]
        %v1555 = vlaneseq
        %v1556 = vshrl.u32 %v1555, 7
        %v1557 = vsub.s32 0, %v1556
        %v1558 = vrot.slane %v1551, %v1557
        %v1559 = vlaneseq
        %v1560 = vshrl.u32 %v1559, 7
        %v1561 = vsub.s32 1, %v1560
        %v1562 = vrot.slane %v1551, %v1561
        %v1563 = vlaneseq
        %v1564 = vshrl.u32 %v1563, 7
        %v1565 = vsub.s32 2, %v1564
        %v1566 = vrot.slane %v1551, %v1565
        %v1567 = vlaneseq
        %v1568 = vshrl.u32 %v1567, 7
        %v1569 = vsub.s32 3, %v1568
        %v1570 = vrot.slane %v1551, %v1569
        %v1571 = vlaneseq
        %v1572 = vshrl.u32 %v1571, 7
        %v1573 = vsub.s32 4, %v1572
        %v1574 = vrot.slane %v1551, %v1573
        %v1575 = vlaneseq
        %v1576 = vshrl.u32 %v1575, 7
        %v1577 = vsub.s32 5, %v1576
        %v1578 = vrot.slane %v1551, %v1577
        %v1579 = vlaneseq
        %v1580 = vshrl.u32 %v1579, 7
        %v1581 = vsub.s32 6, %v1580
        %v1582 = vrot.slane %v1551, %v1581
        %v1583 = vlaneseq
        %v1584 = vshrl.u32 %v1583, 7
        %v1585 = vsub.s32 7, %v1584
        %v1586 = vrot.slane %v1551, %v1585
        %v1587 = vlaneseq
        %v1588 = vshrl.u32 %v1587, 7
        %v1589 = vsub.s32 0, %v1588
        %v1590 = vrot.slane %v1552, %v1589
        %v1591 = vcombine.low %v1558, %v1562
        %v1592 = vcombine.low %v1566, %v1570
        %v1594 = vunpack.c.l.s4 1983009808
        %v1595 = vunpack.c.0.s8 %v1594
        %v1596 = vlaneseq
        %v1597 = vshrl.u32 %v1596, 7
        %v1598 = vsub.s32 %v1595, %v1597
        %v1599 = vrot.slane %v1591, %v1598
        %v1601 = vunpack.c.l.s4 1983009808
        %v1602 = vunpack.c.0.s8 %v1601
        %v1603 = vlaneseq
        %v1604 = vshrl.u32 %v1603, 7
        %v1605 = vsub.s32 %v1602, %v1604
        %v1606 = vrot.slane %v1592, %v1605
        %v1607 = vcombine.low %v1599, %v1606
        %v1608 = vcombine.low %v1574, %v1578
        %v1609 = vcombine.low %v1582, %v1586
        %v1611 = vunpack.c.l.s4 1983009808
        %v1612 = vunpack.c.0.s8 %v1611
        %v1613 = vlaneseq
        %v1614 = vshrl.u32 %v1613, 7
        %v1615 = vsub.s32 %v1612, %v1614
        %v1616 = vrot.slane %v1608, %v1615
        %v1618 = vunpack.c.l.s4 1983009808
        %v1619 = vunpack.c.0.s8 %v1618
        %v1620 = vlaneseq
        %v1621 = vshrl.u32 %v1620, 7
        %v1622 = vsub.s32 %v1619, %v1621
        %v1623 = vrot.slane %v1609, %v1622
        %v1624 = vcombine.low %v1616, %v1623
        %v1626 = vunpack.c.l.s4 1983009808
        %v1627 = vunpack.c.0.s8 %v1626
        %v1628 = vlaneseq
        %v1629 = vshrl.u32 %v1628, 7
        %v1630 = vsub.s32 %v1627, %v1629
        %v1631 = vrot.slane %v1590, %v1630
        %v1635 = vmul.f32 %v1548, %v1607
        %v1636 = vmul.f32 %v1549, %v1624
        %v1637 = vmul.f32 %v1550, %v1631
        %v1638 = vadd.f32 %v1545, %v1635
        %v1639 = vadd.f32 %v1546, %v1636
        %v1640 = vadd.f32 %v1547, %v1637
        %v1641 = vld [vmem:[%s202 + $0x10e] sm:$0xff]
        %v1642 = vld [vmem:[%s202 + $0x116] sm:$0xff]
        %v1643 = vld [vmem:[%s202 + $0x11e] sm:$0x3]
        %v1644 = vld [vmem:[%s211 + $0x87] sm:$0xff]
        %v1645 = vld [vmem:[%s211 + $0x8f] sm:$0x1]
        %v1648 = vlaneseq
        %v1649 = vshrl.u32 %v1648, 7
        %v1650 = vsub.s32 0, %v1649
        %v1651 = vrot.slane %v1644, %v1650
        %v1652 = vlaneseq
        %v1653 = vshrl.u32 %v1652, 7
        %v1654 = vsub.s32 1, %v1653
        %v1655 = vrot.slane %v1644, %v1654
        %v1656 = vlaneseq
        %v1657 = vshrl.u32 %v1656, 7
        %v1658 = vsub.s32 2, %v1657
        %v1659 = vrot.slane %v1644, %v1658
        %v1660 = vlaneseq
        %v1661 = vshrl.u32 %v1660, 7
        %v1662 = vsub.s32 3, %v1661
        %v1663 = vrot.slane %v1644, %v1662
        %v1664 = vlaneseq
        %v1665 = vshrl.u32 %v1664, 7
        %v1666 = vsub.s32 4, %v1665
        %v1667 = vrot.slane %v1644, %v1666
        %v1668 = vlaneseq
        %v1669 = vshrl.u32 %v1668, 7
        %v1670 = vsub.s32 5, %v1669
        %v1671 = vrot.slane %v1644, %v1670
        %v1672 = vlaneseq
        %v1673 = vshrl.u32 %v1672, 7
        %v1674 = vsub.s32 6, %v1673
        %v1675 = vrot.slane %v1644, %v1674
        %v1676 = vlaneseq
        %v1677 = vshrl.u32 %v1676, 7
        %v1678 = vsub.s32 7, %v1677
        %v1679 = vrot.slane %v1644, %v1678
        %v1680 = vlaneseq
        %v1681 = vshrl.u32 %v1680, 7
        %v1682 = vsub.s32 0, %v1681
        %v1683 = vrot.slane %v1645, %v1682
        %v1684 = vcombine.low %v1651, %v1655
        %v1685 = vcombine.low %v1659, %v1663
        %v1687 = vunpack.c.l.s4 1983009808
        %v1688 = vunpack.c.0.s8 %v1687
        %v1689 = vlaneseq
        %v1690 = vshrl.u32 %v1689, 7
        %v1691 = vsub.s32 %v1688, %v1690
        %v1692 = vrot.slane %v1684, %v1691
        %v1694 = vunpack.c.l.s4 1983009808
        %v1695 = vunpack.c.0.s8 %v1694
        %v1696 = vlaneseq
        %v1697 = vshrl.u32 %v1696, 7
        %v1698 = vsub.s32 %v1695, %v1697
        %v1699 = vrot.slane %v1685, %v1698
        %v1700 = vcombine.low %v1692, %v1699
        %v1701 = vcombine.low %v1667, %v1671
        %v1702 = vcombine.low %v1675, %v1679
        %v1704 = vunpack.c.l.s4 1983009808
        %v1705 = vunpack.c.0.s8 %v1704
        %v1706 = vlaneseq
        %v1707 = vshrl.u32 %v1706, 7
        %v1708 = vsub.s32 %v1705, %v1707
        %v1709 = vrot.slane %v1701, %v1708
        %v1711 = vunpack.c.l.s4 1983009808
        %v1712 = vunpack.c.0.s8 %v1711
        %v1713 = vlaneseq
        %v1714 = vshrl.u32 %v1713, 7
        %v1715 = vsub.s32 %v1712, %v1714
        %v1716 = vrot.slane %v1702, %v1715
        %v1717 = vcombine.low %v1709, %v1716
        %v1719 = vunpack.c.l.s4 1983009808
        %v1720 = vunpack.c.0.s8 %v1719
        %v1721 = vlaneseq
        %v1722 = vshrl.u32 %v1721, 7
        %v1723 = vsub.s32 %v1720, %v1722
        %v1724 = vrot.slane %v1683, %v1723
        %v1728 = vmul.f32 %v1641, %v1700
        %v1729 = vmul.f32 %v1642, %v1717
        %v1730 = vmul.f32 %v1643, %v1724
        %v1731 = vadd.f32 %v1638, %v1728
        %v1732 = vadd.f32 %v1639, %v1729
        %v1733 = vadd.f32 %v1640, %v1730
        %v1734 = vld [vmem:[%s202 + $0x120] sm:$0xff]
        %v1735 = vld [vmem:[%s202 + $0x128] sm:$0xff]
        %v1736 = vld [vmem:[%s202 + $0x130] sm:$0x3]
        %v1737 = vld [vmem:[%s211 + $0x90] sm:$0xff]
        %v1738 = vld [vmem:[%s211 + $0x98] sm:$0x1]
        %v1741 = vlaneseq
        %v1742 = vshrl.u32 %v1741, 7
        %v1743 = vsub.s32 0, %v1742
        %v1744 = vrot.slane %v1737, %v1743
        %v1745 = vlaneseq
        %v1746 = vshrl.u32 %v1745, 7
        %v1747 = vsub.s32 1, %v1746
        %v1748 = vrot.slane %v1737, %v1747
        %v1749 = vlaneseq
        %v1750 = vshrl.u32 %v1749, 7
        %v1751 = vsub.s32 2, %v1750
        %v1752 = vrot.slane %v1737, %v1751
        %v1753 = vlaneseq
        %v1754 = vshrl.u32 %v1753, 7
        %v1755 = vsub.s32 3, %v1754
        %v1756 = vrot.slane %v1737, %v1755
        %v1757 = vlaneseq
        %v1758 = vshrl.u32 %v1757, 7
        %v1759 = vsub.s32 4, %v1758
        %v1760 = vrot.slane %v1737, %v1759
        %v1761 = vlaneseq
        %v1762 = vshrl.u32 %v1761, 7
        %v1763 = vsub.s32 5, %v1762
        %v1764 = vrot.slane %v1737, %v1763
        %v1765 = vlaneseq
        %v1766 = vshrl.u32 %v1765, 7
        %v1767 = vsub.s32 6, %v1766
        %v1768 = vrot.slane %v1737, %v1767
        %v1769 = vlaneseq
        %v1770 = vshrl.u32 %v1769, 7
        %v1771 = vsub.s32 7, %v1770
        %v1772 = vrot.slane %v1737, %v1771
        %v1773 = vlaneseq
        %v1774 = vshrl.u32 %v1773, 7
        %v1775 = vsub.s32 0, %v1774
        %v1776 = vrot.slane %v1738, %v1775
        %v1777 = vcombine.low %v1744, %v1748
        %v1778 = vcombine.low %v1752, %v1756
        %v1780 = vunpack.c.l.s4 1983009808
        %v1781 = vunpack.c.0.s8 %v1780
        %v1782 = vlaneseq
        %v1783 = vshrl.u32 %v1782, 7
        %v1784 = vsub.s32 %v1781, %v1783
        %v1785 = vrot.slane %v1777, %v1784
        %v1787 = vunpack.c.l.s4 1983009808
        %v1788 = vunpack.c.0.s8 %v1787
        %v1789 = vlaneseq
        %v1790 = vshrl.u32 %v1789, 7
        %v1791 = vsub.s32 %v1788, %v1790
        %v1792 = vrot.slane %v1778, %v1791
        %v1793 = vcombine.low %v1785, %v1792
        %v1794 = vcombine.low %v1760, %v1764
        %v1795 = vcombine.low %v1768, %v1772
        %v1797 = vunpack.c.l.s4 1983009808
        %v1798 = vunpack.c.0.s8 %v1797
        %v1799 = vlaneseq
        %v1800 = vshrl.u32 %v1799, 7
        %v1801 = vsub.s32 %v1798, %v1800
        %v1802 = vrot.slane %v1794, %v1801
        %v1804 = vunpack.c.l.s4 1983009808
        %v1805 = vunpack.c.0.s8 %v1804
        %v1806 = vlaneseq
        %v1807 = vshrl.u32 %v1806, 7
        %v1808 = vsub.s32 %v1805, %v1807
        %v1809 = vrot.slane %v1795, %v1808
        %v1810 = vcombine.low %v1802, %v1809
        %v1812 = vunpack.c.l.s4 1983009808
        %v1813 = vunpack.c.0.s8 %v1812
        %v1814 = vlaneseq
        %v1815 = vshrl.u32 %v1814, 7
        %v1816 = vsub.s32 %v1813, %v1815
        %v1817 = vrot.slane %v1776, %v1816
        %v1821 = vmul.f32 %v1734, %v1793
        %v1822 = vmul.f32 %v1735, %v1810
        %v1823 = vmul.f32 %v1736, %v1817
        %v1824 = vadd.f32 %v1731, %v1821
        %v1825 = vadd.f32 %v1732, %v1822
        %v1826 = vadd.f32 %v1733, %v1823
        %v1827 = vld [vmem:[%s202 + $0x132] sm:$0xff]
        %v1828 = vld [vmem:[%s202 + $0x13a] sm:$0xff]
        %v1829 = vld [vmem:[%s202 + $0x142] sm:$0x3]
        %v1830 = vld [vmem:[%s211 + $0x99] sm:$0xff]
        %v1831 = vld [vmem:[%s211 + $0xa1] sm:$0x1]
        %v1834 = vlaneseq
        %v1835 = vshrl.u32 %v1834, 7
        %v1836 = vsub.s32 0, %v1835
        %v1837 = vrot.slane %v1830, %v1836
        %v1838 = vlaneseq
        %v1839 = vshrl.u32 %v1838, 7
        %v1840 = vsub.s32 1, %v1839
        %v1841 = vrot.slane %v1830, %v1840
        %v1842 = vlaneseq
        %v1843 = vshrl.u32 %v1842, 7
        %v1844 = vsub.s32 2, %v1843
        %v1845 = vrot.slane %v1830, %v1844
        %v1846 = vlaneseq
        %v1847 = vshrl.u32 %v1846, 7
        %v1848 = vsub.s32 3, %v1847
        %v1849 = vrot.slane %v1830, %v1848
        %v1850 = vlaneseq
        %v1851 = vshrl.u32 %v1850, 7
        %v1852 = vsub.s32 4, %v1851
        %v1853 = vrot.slane %v1830, %v1852
        %v1854 = vlaneseq
        %v1855 = vshrl.u32 %v1854, 7
        %v1856 = vsub.s32 5, %v1855
        %v1857 = vrot.slane %v1830, %v1856
        %v1858 = vlaneseq
        %v1859 = vshrl.u32 %v1858, 7
        %v1860 = vsub.s32 6, %v1859
        %v1861 = vrot.slane %v1830, %v1860
        %v1862 = vlaneseq
        %v1863 = vshrl.u32 %v1862, 7
        %v1864 = vsub.s32 7, %v1863
        %v1865 = vrot.slane %v1830, %v1864
        %v1866 = vlaneseq
        %v1867 = vshrl.u32 %v1866, 7
        %v1868 = vsub.s32 0, %v1867
        %v1869 = vrot.slane %v1831, %v1868
        %v1870 = vcombine.low %v1837, %v1841
        %v1871 = vcombine.low %v1845, %v1849
        %v1873 = vunpack.c.l.s4 1983009808
        %v1874 = vunpack.c.0.s8 %v1873
        %v1875 = vlaneseq
        %v1876 = vshrl.u32 %v1875, 7
        %v1877 = vsub.s32 %v1874, %v1876
        %v1878 = vrot.slane %v1870, %v1877
        %v1880 = vunpack.c.l.s4 1983009808
        %v1881 = vunpack.c.0.s8 %v1880
        %v1882 = vlaneseq
        %v1883 = vshrl.u32 %v1882, 7
        %v1884 = vsub.s32 %v1881, %v1883
        %v1885 = vrot.slane %v1871, %v1884
        %v1886 = vcombine.low %v1878, %v1885
        %v1887 = vcombine.low %v1853, %v1857
        %v1888 = vcombine.low %v1861, %v1865
        %v1890 = vunpack.c.l.s4 1983009808
        %v1891 = vunpack.c.0.s8 %v1890
        %v1892 = vlaneseq
        %v1893 = vshrl.u32 %v1892, 7
        %v1894 = vsub.s32 %v1891, %v1893
        %v1895 = vrot.slane %v1887, %v1894
        %v1897 = vunpack.c.l.s4 1983009808
        %v1898 = vunpack.c.0.s8 %v1897
        %v1899 = vlaneseq
        %v1900 = vshrl.u32 %v1899, 7
        %v1901 = vsub.s32 %v1898, %v1900
        %v1902 = vrot.slane %v1888, %v1901
        %v1903 = vcombine.low %v1895, %v1902
        %v1905 = vunpack.c.l.s4 1983009808
        %v1906 = vunpack.c.0.s8 %v1905
        %v1907 = vlaneseq
        %v1908 = vshrl.u32 %v1907, 7
        %v1909 = vsub.s32 %v1906, %v1908
        %v1910 = vrot.slane %v1869, %v1909
        %v1914 = vmul.f32 %v1827, %v1886
        %v1915 = vmul.f32 %v1828, %v1903
        %v1916 = vmul.f32 %v1829, %v1910
        %v1917 = vadd.f32 %v1824, %v1914
        %v1918 = vadd.f32 %v1825, %v1915
        %v1919 = vadd.f32 %v1826, %v1916
        %v1920 = vld [vmem:[%s202 + $0x144] sm:$0xff]
        %v1921 = vld [vmem:[%s202 + $0x14c] sm:$0xff]
        %v1922 = vld [vmem:[%s202 + $0x154] sm:$0x3]
        %v1923 = vld [vmem:[%s211 + $0xa2] sm:$0xff]
        %v1924 = vld [vmem:[%s211 + $0xaa] sm:$0x1]
        %v1927 = vlaneseq
        %v1928 = vshrl.u32 %v1927, 7
        %v1929 = vsub.s32 0, %v1928
        %v1930 = vrot.slane %v1923, %v1929
        %v1931 = vlaneseq
        %v1932 = vshrl.u32 %v1931, 7
        %v1933 = vsub.s32 1, %v1932
        %v1934 = vrot.slane %v1923, %v1933
        %v1935 = vlaneseq
        %v1936 = vshrl.u32 %v1935, 7
        %v1937 = vsub.s32 2, %v1936
        %v1938 = vrot.slane %v1923, %v1937
        %v1939 = vlaneseq
        %v1940 = vshrl.u32 %v1939, 7
        %v1941 = vsub.s32 3, %v1940
        %v1942 = vrot.slane %v1923, %v1941
        %v1943 = vlaneseq
        %v1944 = vshrl.u32 %v1943, 7
        %v1945 = vsub.s32 4, %v1944
        %v1946 = vrot.slane %v1923, %v1945
        %v1947 = vlaneseq
        %v1948 = vshrl.u32 %v1947, 7
        %v1949 = vsub.s32 5, %v1948
        %v1950 = vrot.slane %v1923, %v1949
        %v1951 = vlaneseq
        %v1952 = vshrl.u32 %v1951, 7
        %v1953 = vsub.s32 6, %v1952
        %v1954 = vrot.slane %v1923, %v1953
        %v1955 = vlaneseq
        %v1956 = vshrl.u32 %v1955, 7
        %v1957 = vsub.s32 7, %v1956
        %v1958 = vrot.slane %v1923, %v1957
        %v1959 = vlaneseq
        %v1960 = vshrl.u32 %v1959, 7
        %v1961 = vsub.s32 0, %v1960
        %v1962 = vrot.slane %v1924, %v1961
        %v1963 = vcombine.low %v1930, %v1934
        %v1964 = vcombine.low %v1938, %v1942
        %v1966 = vunpack.c.l.s4 1983009808
        %v1967 = vunpack.c.0.s8 %v1966
        %v1968 = vlaneseq
        %v1969 = vshrl.u32 %v1968, 7
        %v1970 = vsub.s32 %v1967, %v1969
        %v1971 = vrot.slane %v1963, %v1970
        %v1973 = vunpack.c.l.s4 1983009808
        %v1974 = vunpack.c.0.s8 %v1973
        %v1975 = vlaneseq
        %v1976 = vshrl.u32 %v1975, 7
        %v1977 = vsub.s32 %v1974, %v1976
        %v1978 = vrot.slane %v1964, %v1977
        %v1979 = vcombine.low %v1971, %v1978
        %v1980 = vcombine.low %v1946, %v1950
        %v1981 = vcombine.low %v1954, %v1958
        %v1983 = vunpack.c.l.s4 1983009808
        %v1984 = vunpack.c.0.s8 %v1983
        %v1985 = vlaneseq
        %v1986 = vshrl.u32 %v1985, 7
        %v1987 = vsub.s32 %v1984, %v1986
        %v1988 = vrot.slane %v1980, %v1987
        %v1990 = vunpack.c.l.s4 1983009808
        %v1991 = vunpack.c.0.s8 %v1990
        %v1992 = vlaneseq
        %v1993 = vshrl.u32 %v1992, 7
        %v1994 = vsub.s32 %v1991, %v1993
        %v1995 = vrot.slane %v1981, %v1994
        %v1996 = vcombine.low %v1988, %v1995
        %v1998 = vunpack.c.l.s4 1983009808
        %v1999 = vunpack.c.0.s8 %v1998
        %v2000 = vlaneseq
        %v2001 = vshrl.u32 %v2000, 7
        %v2002 = vsub.s32 %v1999, %v2001
        %v2003 = vrot.slane %v1962, %v2002
        %v2007 = vmul.f32 %v1920, %v1979
        %v2008 = vmul.f32 %v1921, %v1996
        %v2009 = vmul.f32 %v1922, %v2003
        %v2010 = vadd.f32 %v1917, %v2007
        %v2011 = vadd.f32 %v1918, %v2008
        %v2012 = vadd.f32 %v1919, %v2009
        %v2013 = vld [vmem:[%s202 + $0x156] sm:$0xff]
        %v2014 = vld [vmem:[%s202 + $0x15e] sm:$0xff]
        %v2015 = vld [vmem:[%s202 + $0x166] sm:$0x3]
        %v2016 = vld [vmem:[%s211 + $0xab] sm:$0xff]
        %v2017 = vld [vmem:[%s211 + $0xb3] sm:$0x1]
        %v2020 = vlaneseq
        %v2021 = vshrl.u32 %v2020, 7
        %v2022 = vsub.s32 0, %v2021
        %v2023 = vrot.slane %v2016, %v2022
        %v2024 = vlaneseq
        %v2025 = vshrl.u32 %v2024, 7
        %v2026 = vsub.s32 1, %v2025
        %v2027 = vrot.slane %v2016, %v2026
        %v2028 = vlaneseq
        %v2029 = vshrl.u32 %v2028, 7
        %v2030 = vsub.s32 2, %v2029
        %v2031 = vrot.slane %v2016, %v2030
        %v2032 = vlaneseq
        %v2033 = vshrl.u32 %v2032, 7
        %v2034 = vsub.s32 3, %v2033
        %v2035 = vrot.slane %v2016, %v2034
        %v2036 = vlaneseq
        %v2037 = vshrl.u32 %v2036, 7
        %v2038 = vsub.s32 4, %v2037
        %v2039 = vrot.slane %v2016, %v2038
        %v2040 = vlaneseq
        %v2041 = vshrl.u32 %v2040, 7
        %v2042 = vsub.s32 5, %v2041
        %v2043 = vrot.slane %v2016, %v2042
        %v2044 = vlaneseq
        %v2045 = vshrl.u32 %v2044, 7
        %v2046 = vsub.s32 6, %v2045
        %v2047 = vrot.slane %v2016, %v2046
        %v2048 = vlaneseq
        %v2049 = vshrl.u32 %v2048, 7
        %v2050 = vsub.s32 7, %v2049
        %v2051 = vrot.slane %v2016, %v2050
        %v2052 = vlaneseq
        %v2053 = vshrl.u32 %v2052, 7
        %v2054 = vsub.s32 0, %v2053
        %v2055 = vrot.slane %v2017, %v2054
        %v2056 = vcombine.low %v2023, %v2027
        %v2057 = vcombine.low %v2031, %v2035
        %v2059 = vunpack.c.l.s4 1983009808
        %v2060 = vunpack.c.0.s8 %v2059
        %v2061 = vlaneseq
        %v2062 = vshrl.u32 %v2061, 7
        %v2063 = vsub.s32 %v2060, %v2062
        %v2064 = vrot.slane %v2056, %v2063
        %v2066 = vunpack.c.l.s4 1983009808
        %v2067 = vunpack.c.0.s8 %v2066
        %v2068 = vlaneseq
        %v2069 = vshrl.u32 %v2068, 7
        %v2070 = vsub.s32 %v2067, %v2069
        %v2071 = vrot.slane %v2057, %v2070
        %v2072 = vcombine.low %v2064, %v2071
        %v2073 = vcombine.low %v2039, %v2043
        %v2074 = vcombine.low %v2047, %v2051
        %v2076 = vunpack.c.l.s4 1983009808
        %v2077 = vunpack.c.0.s8 %v2076
        %v2078 = vlaneseq
        %v2079 = vshrl.u32 %v2078, 7
        %v2080 = vsub.s32 %v2077, %v2079
        %v2081 = vrot.slane %v2073, %v2080
        %v2083 = vunpack.c.l.s4 1983009808
        %v2084 = vunpack.c.0.s8 %v2083
        %v2085 = vlaneseq
        %v2086 = vshrl.u32 %v2085, 7
        %v2087 = vsub.s32 %v2084, %v2086
        %v2088 = vrot.slane %v2074, %v2087
        %v2089 = vcombine.low %v2081, %v2088
        %v2091 = vunpack.c.l.s4 1983009808
        %v2092 = vunpack.c.0.s8 %v2091
        %v2093 = vlaneseq
        %v2094 = vshrl.u32 %v2093, 7
        %v2095 = vsub.s32 %v2092, %v2094
        %v2096 = vrot.slane %v2055, %v2095
        %v2100 = vmul.f32 %v2013, %v2072
        %v2101 = vmul.f32 %v2014, %v2089
        %v2102 = vmul.f32 %v2015, %v2096
        %v2103 = vadd.f32 %v2010, %v2100
        %v2104 = vadd.f32 %v2011, %v2101
        %v2105 = vadd.f32 %v2012, %v2102
        %v2106 = vld [vmem:[%s202 + $0x168] sm:$0xff]
        %v2107 = vld [vmem:[%s202 + $0x170] sm:$0xff]
        %v2108 = vld [vmem:[%s202 + $0x178] sm:$0x3]
        %v2109 = vld [vmem:[%s211 + $0xb4] sm:$0xff]
        %v2110 = vld [vmem:[%s211 + $0xbc] sm:$0x1]
        %v2113 = vlaneseq
        %v2114 = vshrl.u32 %v2113, 7
        %v2115 = vsub.s32 0, %v2114
        %v2116 = vrot.slane %v2109, %v2115
        %v2117 = vlaneseq
        %v2118 = vshrl.u32 %v2117, 7
        %v2119 = vsub.s32 1, %v2118
        %v2120 = vrot.slane %v2109, %v2119
        %v2121 = vlaneseq
        %v2122 = vshrl.u32 %v2121, 7
        %v2123 = vsub.s32 2, %v2122
        %v2124 = vrot.slane %v2109, %v2123
        %v2125 = vlaneseq
        %v2126 = vshrl.u32 %v2125, 7
        %v2127 = vsub.s32 3, %v2126
        %v2128 = vrot.slane %v2109, %v2127
        %v2129 = vlaneseq
        %v2130 = vshrl.u32 %v2129, 7
        %v2131 = vsub.s32 4, %v2130
        %v2132 = vrot.slane %v2109, %v2131
        %v2133 = vlaneseq
        %v2134 = vshrl.u32 %v2133, 7
        %v2135 = vsub.s32 5, %v2134
        %v2136 = vrot.slane %v2109, %v2135
        %v2137 = vlaneseq
        %v2138 = vshrl.u32 %v2137, 7
        %v2139 = vsub.s32 6, %v2138
        %v2140 = vrot.slane %v2109, %v2139
        %v2141 = vlaneseq
        %v2142 = vshrl.u32 %v2141, 7
        %v2143 = vsub.s32 7, %v2142
        %v2144 = vrot.slane %v2109, %v2143
        %v2145 = vlaneseq
        %v2146 = vshrl.u32 %v2145, 7
        %v2147 = vsub.s32 0, %v2146
        %v2148 = vrot.slane %v2110, %v2147
        %v2149 = vcombine.low %v2116, %v2120
        %v2150 = vcombine.low %v2124, %v2128
        %v2152 = vunpack.c.l.s4 1983009808
        %v2153 = vunpack.c.0.s8 %v2152
        %v2154 = vlaneseq
        %v2155 = vshrl.u32 %v2154, 7
        %v2156 = vsub.s32 %v2153, %v2155
        %v2157 = vrot.slane %v2149, %v2156
        %v2159 = vunpack.c.l.s4 1983009808
        %v2160 = vunpack.c.0.s8 %v2159
        %v2161 = vlaneseq
        %v2162 = vshrl.u32 %v2161, 7
        %v2163 = vsub.s32 %v2160, %v2162
        %v2164 = vrot.slane %v2150, %v2163
        %v2165 = vcombine.low %v2157, %v2164
        %v2166 = vcombine.low %v2132, %v2136
        %v2167 = vcombine.low %v2140, %v2144
        %v2169 = vunpack.c.l.s4 1983009808
        %v2170 = vunpack.c.0.s8 %v2169
        %v2171 = vlaneseq
        %v2172 = vshrl.u32 %v2171, 7
        %v2173 = vsub.s32 %v2170, %v2172
        %v2174 = vrot.slane %v2166, %v2173
        %v2176 = vunpack.c.l.s4 1983009808
        %v2177 = vunpack.c.0.s8 %v2176
        %v2178 = vlaneseq
        %v2179 = vshrl.u32 %v2178, 7
        %v2180 = vsub.s32 %v2177, %v2179
        %v2181 = vrot.slane %v2167, %v2180
        %v2182 = vcombine.low %v2174, %v2181
        %v2184 = vunpack.c.l.s4 1983009808
        %v2185 = vunpack.c.0.s8 %v2184
        %v2186 = vlaneseq
        %v2187 = vshrl.u32 %v2186, 7
        %v2188 = vsub.s32 %v2185, %v2187
        %v2189 = vrot.slane %v2148, %v2188
        %v2193 = vmul.f32 %v2106, %v2165
        %v2194 = vmul.f32 %v2107, %v2182
        %v2195 = vmul.f32 %v2108, %v2189
        %v2196 = vadd.f32 %v2103, %v2193
        %v2197 = vadd.f32 %v2104, %v2194
        %v2198 = vadd.f32 %v2105, %v2195
        %v2199 = vld [vmem:[%s202 + $0x17a] sm:$0xff]
        %v2200 = vld [vmem:[%s202 + $0x182] sm:$0xff]
        %v2201 = vld [vmem:[%s202 + $0x18a] sm:$0x3]
        %v2202 = vld [vmem:[%s211 + $0xbd] sm:$0xff]
        %v2203 = vld [vmem:[%s211 + $0xc5] sm:$0x1]
        %v2206 = vlaneseq
        %v2207 = vshrl.u32 %v2206, 7
        %v2208 = vsub.s32 0, %v2207
        %v2209 = vrot.slane %v2202, %v2208
        %v2210 = vlaneseq
        %v2211 = vshrl.u32 %v2210, 7
        %v2212 = vsub.s32 1, %v2211
        %v2213 = vrot.slane %v2202, %v2212
        %v2214 = vlaneseq
        %v2215 = vshrl.u32 %v2214, 7
        %v2216 = vsub.s32 2, %v2215
        %v2217 = vrot.slane %v2202, %v2216
        %v2218 = vlaneseq
        %v2219 = vshrl.u32 %v2218, 7
        %v2220 = vsub.s32 3, %v2219
        %v2221 = vrot.slane %v2202, %v2220
        %v2222 = vlaneseq
        %v2223 = vshrl.u32 %v2222, 7
        %v2224 = vsub.s32 4, %v2223
        %v2225 = vrot.slane %v2202, %v2224
        %v2226 = vlaneseq
        %v2227 = vshrl.u32 %v2226, 7
        %v2228 = vsub.s32 5, %v2227
        %v2229 = vrot.slane %v2202, %v2228
        %v2230 = vlaneseq
        %v2231 = vshrl.u32 %v2230, 7
        %v2232 = vsub.s32 6, %v2231
        %v2233 = vrot.slane %v2202, %v2232
        %v2234 = vlaneseq
        %v2235 = vshrl.u32 %v2234, 7
        %v2236 = vsub.s32 7, %v2235
        %v2237 = vrot.slane %v2202, %v2236
        %v2238 = vlaneseq
        %v2239 = vshrl.u32 %v2238, 7
        %v2240 = vsub.s32 0, %v2239
        %v2241 = vrot.slane %v2203, %v2240
        %v2242 = vcombine.low %v2209, %v2213
        %v2243 = vcombine.low %v2217, %v2221
        %v2245 = vunpack.c.l.s4 1983009808
        %v2246 = vunpack.c.0.s8 %v2245
        %v2247 = vlaneseq
        %v2248 = vshrl.u32 %v2247, 7
        %v2249 = vsub.s32 %v2246, %v2248
        %v2250 = vrot.slane %v2242, %v2249
        %v2252 = vunpack.c.l.s4 1983009808
        %v2253 = vunpack.c.0.s8 %v2252
        %v2254 = vlaneseq
        %v2255 = vshrl.u32 %v2254, 7
        %v2256 = vsub.s32 %v2253, %v2255
        %v2257 = vrot.slane %v2243, %v2256
        %v2258 = vcombine.low %v2250, %v2257
        %v2259 = vcombine.low %v2225, %v2229
        %v2260 = vcombine.low %v2233, %v2237
        %v2262 = vunpack.c.l.s4 1983009808
        %v2263 = vunpack.c.0.s8 %v2262
        %v2264 = vlaneseq
        %v2265 = vshrl.u32 %v2264, 7
        %v2266 = vsub.s32 %v2263, %v2265
        %v2267 = vrot.slane %v2259, %v2266
        %v2269 = vunpack.c.l.s4 1983009808
        %v2270 = vunpack.c.0.s8 %v2269
        %v2271 = vlaneseq
        %v2272 = vshrl.u32 %v2271, 7
        %v2273 = vsub.s32 %v2270, %v2272
        %v2274 = vrot.slane %v2260, %v2273
        %v2275 = vcombine.low %v2267, %v2274
        %v2277 = vunpack.c.l.s4 1983009808
        %v2278 = vunpack.c.0.s8 %v2277
        %v2279 = vlaneseq
        %v2280 = vshrl.u32 %v2279, 7
        %v2281 = vsub.s32 %v2278, %v2280
        %v2282 = vrot.slane %v2241, %v2281
        %v2286 = vmul.f32 %v2199, %v2258
        %v2287 = vmul.f32 %v2200, %v2275
        %v2288 = vmul.f32 %v2201, %v2282
        %v2289 = vadd.f32 %v2196, %v2286
        %v2290 = vadd.f32 %v2197, %v2287
        %v2291 = vadd.f32 %v2198, %v2288
        %v2292 = vld [vmem:[%s202 + $0x18c] sm:$0xff]
        %v2293 = vld [vmem:[%s202 + $0x194] sm:$0xff]
        %v2294 = vld [vmem:[%s202 + $0x19c] sm:$0x3]
        %v2295 = vld [vmem:[%s211 + $0xc6] sm:$0xff]
        %v2296 = vld [vmem:[%s211 + $0xce] sm:$0x1]
        %v2299 = vlaneseq
        %v2300 = vshrl.u32 %v2299, 7
        %v2301 = vsub.s32 0, %v2300
        %v2302 = vrot.slane %v2295, %v2301
        %v2303 = vlaneseq
        %v2304 = vshrl.u32 %v2303, 7
        %v2305 = vsub.s32 1, %v2304
        %v2306 = vrot.slane %v2295, %v2305
        %v2307 = vlaneseq
        %v2308 = vshrl.u32 %v2307, 7
        %v2309 = vsub.s32 2, %v2308
        %v2310 = vrot.slane %v2295, %v2309
        %v2311 = vlaneseq
        %v2312 = vshrl.u32 %v2311, 7
        %v2313 = vsub.s32 3, %v2312
        %v2314 = vrot.slane %v2295, %v2313
        %v2315 = vlaneseq
        %v2316 = vshrl.u32 %v2315, 7
        %v2317 = vsub.s32 4, %v2316
        %v2318 = vrot.slane %v2295, %v2317
        %v2319 = vlaneseq
        %v2320 = vshrl.u32 %v2319, 7
        %v2321 = vsub.s32 5, %v2320
        %v2322 = vrot.slane %v2295, %v2321
        %v2323 = vlaneseq
        %v2324 = vshrl.u32 %v2323, 7
        %v2325 = vsub.s32 6, %v2324
        %v2326 = vrot.slane %v2295, %v2325
        %v2327 = vlaneseq
        %v2328 = vshrl.u32 %v2327, 7
        %v2329 = vsub.s32 7, %v2328
        %v2330 = vrot.slane %v2295, %v2329
        %v2331 = vlaneseq
        %v2332 = vshrl.u32 %v2331, 7
        %v2333 = vsub.s32 0, %v2332
        %v2334 = vrot.slane %v2296, %v2333
        %v2335 = vcombine.low %v2302, %v2306
        %v2336 = vcombine.low %v2310, %v2314
        %v2338 = vunpack.c.l.s4 1983009808
        %v2339 = vunpack.c.0.s8 %v2338
        %v2340 = vlaneseq
        %v2341 = vshrl.u32 %v2340, 7
        %v2342 = vsub.s32 %v2339, %v2341
        %v2343 = vrot.slane %v2335, %v2342
        %v2345 = vunpack.c.l.s4 1983009808
        %v2346 = vunpack.c.0.s8 %v2345
        %v2347 = vlaneseq
        %v2348 = vshrl.u32 %v2347, 7
        %v2349 = vsub.s32 %v2346, %v2348
        %v2350 = vrot.slane %v2336, %v2349
        %v2351 = vcombine.low %v2343, %v2350
        %v2352 = vcombine.low %v2318, %v2322
        %v2353 = vcombine.low %v2326, %v2330
        %v2355 = vunpack.c.l.s4 1983009808
        %v2356 = vunpack.c.0.s8 %v2355
        %v2357 = vlaneseq
        %v2358 = vshrl.u32 %v2357, 7
        %v2359 = vsub.s32 %v2356, %v2358
        %v2360 = vrot.slane %v2352, %v2359
        %v2362 = vunpack.c.l.s4 1983009808
        %v2363 = vunpack.c.0.s8 %v2362
        %v2364 = vlaneseq
        %v2365 = vshrl.u32 %v2364, 7
        %v2366 = vsub.s32 %v2363, %v2365
        %v2367 = vrot.slane %v2353, %v2366
        %v2368 = vcombine.low %v2360, %v2367
        %v2370 = vunpack.c.l.s4 1983009808
        %v2371 = vunpack.c.0.s8 %v2370
        %v2372 = vlaneseq
        %v2373 = vshrl.u32 %v2372, 7
        %v2374 = vsub.s32 %v2371, %v2373
        %v2375 = vrot.slane %v2334, %v2374
        %v2379 = vmul.f32 %v2292, %v2351
        %v2380 = vmul.f32 %v2293, %v2368
        %v2381 = vmul.f32 %v2294, %v2375
        %v2382 = vadd.f32 %v2289, %v2379
        %v2383 = vadd.f32 %v2290, %v2380
        %v2384 = vadd.f32 %v2291, %v2381
        %v2385 = vld [vmem:[%s202 + $0x19e] sm:$0xff]
        %v2386 = vld [vmem:[%s202 + $0x1a6] sm:$0xff]
        %v2387 = vld [vmem:[%s202 + $0x1ae] sm:$0x3]
        %v2388 = vld [vmem:[%s211 + $0xcf] sm:$0xff]
        %v2389 = vld [vmem:[%s211 + $0xd7] sm:$0x1]
        %v2392 = vlaneseq
        %v2393 = vshrl.u32 %v2392, 7
        %v2394 = vsub.s32 0, %v2393
        %v2395 = vrot.slane %v2388, %v2394
        %v2396 = vlaneseq
        %v2397 = vshrl.u32 %v2396, 7
        %v2398 = vsub.s32 1, %v2397
        %v2399 = vrot.slane %v2388, %v2398
        %v2400 = vlaneseq
        %v2401 = vshrl.u32 %v2400, 7
        %v2402 = vsub.s32 2, %v2401
        %v2403 = vrot.slane %v2388, %v2402
        %v2404 = vlaneseq
        %v2405 = vshrl.u32 %v2404, 7
        %v2406 = vsub.s32 3, %v2405
        %v2407 = vrot.slane %v2388, %v2406
        %v2408 = vlaneseq
        %v2409 = vshrl.u32 %v2408, 7
        %v2410 = vsub.s32 4, %v2409
        %v2411 = vrot.slane %v2388, %v2410
        %v2412 = vlaneseq
        %v2413 = vshrl.u32 %v2412, 7
        %v2414 = vsub.s32 5, %v2413
        %v2415 = vrot.slane %v2388, %v2414
        %v2416 = vlaneseq
        %v2417 = vshrl.u32 %v2416, 7
        %v2418 = vsub.s32 6, %v2417
        %v2419 = vrot.slane %v2388, %v2418
        %v2420 = vlaneseq
        %v2421 = vshrl.u32 %v2420, 7
        %v2422 = vsub.s32 7, %v2421
        %v2423 = vrot.slane %v2388, %v2422
        %v2424 = vlaneseq
        %v2425 = vshrl.u32 %v2424, 7
        %v2426 = vsub.s32 0, %v2425
        %v2427 = vrot.slane %v2389, %v2426
        %v2428 = vcombine.low %v2395, %v2399
        %v2429 = vcombine.low %v2403, %v2407
        %v2431 = vunpack.c.l.s4 1983009808
        %v2432 = vunpack.c.0.s8 %v2431
        %v2433 = vlaneseq
        %v2434 = vshrl.u32 %v2433, 7
        %v2435 = vsub.s32 %v2432, %v2434
        %v2436 = vrot.slane %v2428, %v2435
        %v2438 = vunpack.c.l.s4 1983009808
        %v2439 = vunpack.c.0.s8 %v2438
        %v2440 = vlaneseq
        %v2441 = vshrl.u32 %v2440, 7
        %v2442 = vsub.s32 %v2439, %v2441
        %v2443 = vrot.slane %v2429, %v2442
        %v2444 = vcombine.low %v2436, %v2443
        %v2445 = vcombine.low %v2411, %v2415
        %v2446 = vcombine.low %v2419, %v2423
        %v2448 = vunpack.c.l.s4 1983009808
        %v2449 = vunpack.c.0.s8 %v2448
        %v2450 = vlaneseq
        %v2451 = vshrl.u32 %v2450, 7
        %v2452 = vsub.s32 %v2449, %v2451
        %v2453 = vrot.slane %v2445, %v2452
        %v2455 = vunpack.c.l.s4 1983009808
        %v2456 = vunpack.c.0.s8 %v2455
        %v2457 = vlaneseq
        %v2458 = vshrl.u32 %v2457, 7
        %v2459 = vsub.s32 %v2456, %v2458
        %v2460 = vrot.slane %v2446, %v2459
        %v2461 = vcombine.low %v2453, %v2460
        %v2463 = vunpack.c.l.s4 1983009808
        %v2464 = vunpack.c.0.s8 %v2463
        %v2465 = vlaneseq
        %v2466 = vshrl.u32 %v2465, 7
        %v2467 = vsub.s32 %v2464, %v2466
        %v2468 = vrot.slane %v2427, %v2467
        %v2472 = vmul.f32 %v2385, %v2444
        %v2473 = vmul.f32 %v2386, %v2461
        %v2474 = vmul.f32 %v2387, %v2468
        %v2475 = vadd.f32 %v2382, %v2472
        %v2476 = vadd.f32 %v2383, %v2473
        %v2477 = vadd.f32 %v2384, %v2474
        %v2478 = vld [vmem:[%s202 + $0x1b0] sm:$0xff]
        %v2479 = vld [vmem:[%s202 + $0x1b8] sm:$0xff]
        %v2480 = vld [vmem:[%s202 + $0x1c0] sm:$0x3]
        %v2481 = vld [vmem:[%s211 + $0xd8] sm:$0xff]
        %v2482 = vld [vmem:[%s211 + $0xe0] sm:$0x1]
        %v2485 = vlaneseq
        %v2486 = vshrl.u32 %v2485, 7
        %v2487 = vsub.s32 0, %v2486
        %v2488 = vrot.slane %v2481, %v2487
        %v2489 = vlaneseq
        %v2490 = vshrl.u32 %v2489, 7
        %v2491 = vsub.s32 1, %v2490
        %v2492 = vrot.slane %v2481, %v2491
        %v2493 = vlaneseq
        %v2494 = vshrl.u32 %v2493, 7
        %v2495 = vsub.s32 2, %v2494
        %v2496 = vrot.slane %v2481, %v2495
        %v2497 = vlaneseq
        %v2498 = vshrl.u32 %v2497, 7
        %v2499 = vsub.s32 3, %v2498
        %v2500 = vrot.slane %v2481, %v2499
        %v2501 = vlaneseq
        %v2502 = vshrl.u32 %v2501, 7
        %v2503 = vsub.s32 4, %v2502
        %v2504 = vrot.slane %v2481, %v2503
        %v2505 = vlaneseq
        %v2506 = vshrl.u32 %v2505, 7
        %v2507 = vsub.s32 5, %v2506
        %v2508 = vrot.slane %v2481, %v2507
        %v2509 = vlaneseq
        %v2510 = vshrl.u32 %v2509, 7
        %v2511 = vsub.s32 6, %v2510
        %v2512 = vrot.slane %v2481, %v2511
        %v2513 = vlaneseq
        %v2514 = vshrl.u32 %v2513, 7
        %v2515 = vsub.s32 7, %v2514
        %v2516 = vrot.slane %v2481, %v2515
        %v2517 = vlaneseq
        %v2518 = vshrl.u32 %v2517, 7
        %v2519 = vsub.s32 0, %v2518
        %v2520 = vrot.slane %v2482, %v2519
        %v2521 = vcombine.low %v2488, %v2492
        %v2522 = vcombine.low %v2496, %v2500
        %v2524 = vunpack.c.l.s4 1983009808
        %v2525 = vunpack.c.0.s8 %v2524
        %v2526 = vlaneseq
        %v2527 = vshrl.u32 %v2526, 7
        %v2528 = vsub.s32 %v2525, %v2527
        %v2529 = vrot.slane %v2521, %v2528
        %v2531 = vunpack.c.l.s4 1983009808
        %v2532 = vunpack.c.0.s8 %v2531
        %v2533 = vlaneseq
        %v2534 = vshrl.u32 %v2533, 7
        %v2535 = vsub.s32 %v2532, %v2534
        %v2536 = vrot.slane %v2522, %v2535
        %v2537 = vcombine.low %v2529, %v2536
        %v2538 = vcombine.low %v2504, %v2508
        %v2539 = vcombine.low %v2512, %v2516
        %v2541 = vunpack.c.l.s4 1983009808
        %v2542 = vunpack.c.0.s8 %v2541
        %v2543 = vlaneseq
        %v2544 = vshrl.u32 %v2543, 7
        %v2545 = vsub.s32 %v2542, %v2544
        %v2546 = vrot.slane %v2538, %v2545
        %v2548 = vunpack.c.l.s4 1983009808
        %v2549 = vunpack.c.0.s8 %v2548
        %v2550 = vlaneseq
        %v2551 = vshrl.u32 %v2550, 7
        %v2552 = vsub.s32 %v2549, %v2551
        %v2553 = vrot.slane %v2539, %v2552
        %v2554 = vcombine.low %v2546, %v2553
        %v2556 = vunpack.c.l.s4 1983009808
        %v2557 = vunpack.c.0.s8 %v2556
        %v2558 = vlaneseq
        %v2559 = vshrl.u32 %v2558, 7
        %v2560 = vsub.s32 %v2557, %v2559
        %v2561 = vrot.slane %v2520, %v2560
        %v2565 = vmul.f32 %v2478, %v2537
        %v2566 = vmul.f32 %v2479, %v2554
        %v2567 = vmul.f32 %v2480, %v2561
        %v2568 = vadd.f32 %v2475, %v2565
        %v2569 = vadd.f32 %v2476, %v2566
        %v2570 = vadd.f32 %v2477, %v2567
        %v2571 = vld [vmem:[%s202 + $0x1c2] sm:$0xff]
        %v2572 = vld [vmem:[%s202 + $0x1ca] sm:$0xff]
        %v2573 = vld [vmem:[%s202 + $0x1d2] sm:$0x3]
        %v2574 = vld [vmem:[%s211 + $0xe1] sm:$0xff]
        %v2575 = vld [vmem:[%s211 + $0xe9] sm:$0x1]
        %v2578 = vlaneseq
        %v2579 = vshrl.u32 %v2578, 7
        %v2580 = vsub.s32 0, %v2579
        %v2581 = vrot.slane %v2574, %v2580
        %v2582 = vlaneseq
        %v2583 = vshrl.u32 %v2582, 7
        %v2584 = vsub.s32 1, %v2583
        %v2585 = vrot.slane %v2574, %v2584
        %v2586 = vlaneseq
        %v2587 = vshrl.u32 %v2586, 7
        %v2588 = vsub.s32 2, %v2587
        %v2589 = vrot.slane %v2574, %v2588
        %v2590 = vlaneseq
        %v2591 = vshrl.u32 %v2590, 7
        %v2592 = vsub.s32 3, %v2591
        %v2593 = vrot.slane %v2574, %v2592
        %v2594 = vlaneseq
        %v2595 = vshrl.u32 %v2594, 7
        %v2596 = vsub.s32 4, %v2595
        %v2597 = vrot.slane %v2574, %v2596
        %v2598 = vlaneseq
        %v2599 = vshrl.u32 %v2598, 7
        %v2600 = vsub.s32 5, %v2599
        %v2601 = vrot.slane %v2574, %v2600
        %v2602 = vlaneseq
        %v2603 = vshrl.u32 %v2602, 7
        %v2604 = vsub.s32 6, %v2603
        %v2605 = vrot.slane %v2574, %v2604
        %v2606 = vlaneseq
        %v2607 = vshrl.u32 %v2606, 7
        %v2608 = vsub.s32 7, %v2607
        %v2609 = vrot.slane %v2574, %v2608
        %v2610 = vlaneseq
        %v2611 = vshrl.u32 %v2610, 7
        %v2612 = vsub.s32 0, %v2611
        %v2613 = vrot.slane %v2575, %v2612
        %v2614 = vcombine.low %v2581, %v2585
        %v2615 = vcombine.low %v2589, %v2593
        %v2617 = vunpack.c.l.s4 1983009808
        %v2618 = vunpack.c.0.s8 %v2617
        %v2619 = vlaneseq
        %v2620 = vshrl.u32 %v2619, 7
        %v2621 = vsub.s32 %v2618, %v2620
        %v2622 = vrot.slane %v2614, %v2621
        %v2624 = vunpack.c.l.s4 1983009808
        %v2625 = vunpack.c.0.s8 %v2624
        %v2626 = vlaneseq
        %v2627 = vshrl.u32 %v2626, 7
        %v2628 = vsub.s32 %v2625, %v2627
        %v2629 = vrot.slane %v2615, %v2628
        %v2630 = vcombine.low %v2622, %v2629
        %v2631 = vcombine.low %v2597, %v2601
        %v2632 = vcombine.low %v2605, %v2609
        %v2634 = vunpack.c.l.s4 1983009808
        %v2635 = vunpack.c.0.s8 %v2634
        %v2636 = vlaneseq
        %v2637 = vshrl.u32 %v2636, 7
        %v2638 = vsub.s32 %v2635, %v2637
        %v2639 = vrot.slane %v2631, %v2638
        %v2641 = vunpack.c.l.s4 1983009808
        %v2642 = vunpack.c.0.s8 %v2641
        %v2643 = vlaneseq
        %v2644 = vshrl.u32 %v2643, 7
        %v2645 = vsub.s32 %v2642, %v2644
        %v2646 = vrot.slane %v2632, %v2645
        %v2647 = vcombine.low %v2639, %v2646
        %v2649 = vunpack.c.l.s4 1983009808
        %v2650 = vunpack.c.0.s8 %v2649
        %v2651 = vlaneseq
        %v2652 = vshrl.u32 %v2651, 7
        %v2653 = vsub.s32 %v2650, %v2652
        %v2654 = vrot.slane %v2613, %v2653
        %v2658 = vmul.f32 %v2571, %v2630
        %v2659 = vmul.f32 %v2572, %v2647
        %v2660 = vmul.f32 %v2573, %v2654
        %v2661 = vadd.f32 %v2568, %v2658
        %v2662 = vadd.f32 %v2569, %v2659
        %v2663 = vadd.f32 %v2570, %v2660
        %v2664 = vld [vmem:[%s202 + $0x1d4] sm:$0xff]
        %v2665 = vld [vmem:[%s202 + $0x1dc] sm:$0xff]
        %v2666 = vld [vmem:[%s202 + $0x1e4] sm:$0x3]
        %v2667 = vld [vmem:[%s211 + $0xea] sm:$0xff]
        %v2668 = vld [vmem:[%s211 + $0xf2] sm:$0x1]
        %v2671 = vlaneseq
        %v2672 = vshrl.u32 %v2671, 7
        %v2673 = vsub.s32 0, %v2672
        %v2674 = vrot.slane %v2667, %v2673
        %v2675 = vlaneseq
        %v2676 = vshrl.u32 %v2675, 7
        %v2677 = vsub.s32 1, %v2676
        %v2678 = vrot.slane %v2667, %v2677
        %v2679 = vlaneseq
        %v2680 = vshrl.u32 %v2679, 7
        %v2681 = vsub.s32 2, %v2680
        %v2682 = vrot.slane %v2667, %v2681
        %v2683 = vlaneseq
        %v2684 = vshrl.u32 %v2683, 7
        %v2685 = vsub.s32 3, %v2684
        %v2686 = vrot.slane %v2667, %v2685
        %v2687 = vlaneseq
        %v2688 = vshrl.u32 %v2687, 7
        %v2689 = vsub.s32 4, %v2688
        %v2690 = vrot.slane %v2667, %v2689
        %v2691 = vlaneseq
        %v2692 = vshrl.u32 %v2691, 7
        %v2693 = vsub.s32 5, %v2692
        %v2694 = vrot.slane %v2667, %v2693
        %v2695 = vlaneseq
        %v2696 = vshrl.u32 %v2695, 7
        %v2697 = vsub.s32 6, %v2696
        %v2698 = vrot.slane %v2667, %v2697
        %v2699 = vlaneseq
        %v2700 = vshrl.u32 %v2699, 7
        %v2701 = vsub.s32 7, %v2700
        %v2702 = vrot.slane %v2667, %v2701
        %v2703 = vlaneseq
        %v2704 = vshrl.u32 %v2703, 7
        %v2705 = vsub.s32 0, %v2704
        %v2706 = vrot.slane %v2668, %v2705
        %v2707 = vcombine.low %v2674, %v2678
        %v2708 = vcombine.low %v2682, %v2686
        %v2710 = vunpack.c.l.s4 1983009808
        %v2711 = vunpack.c.0.s8 %v2710
        %v2712 = vlaneseq
        %v2713 = vshrl.u32 %v2712, 7
        %v2714 = vsub.s32 %v2711, %v2713
        %v2715 = vrot.slane %v2707, %v2714
        %v2717 = vunpack.c.l.s4 1983009808
        %v2718 = vunpack.c.0.s8 %v2717
        %v2719 = vlaneseq
        %v2720 = vshrl.u32 %v2719, 7
        %v2721 = vsub.s32 %v2718, %v2720
        %v2722 = vrot.slane %v2708, %v2721
        %v2723 = vcombine.low %v2715, %v2722
        %v2724 = vcombine.low %v2690, %v2694
        %v2725 = vcombine.low %v2698, %v2702
        %v2727 = vunpack.c.l.s4 1983009808
        %v2728 = vunpack.c.0.s8 %v2727
        %v2729 = vlaneseq
        %v2730 = vshrl.u32 %v2729, 7
        %v2731 = vsub.s32 %v2728, %v2730
        %v2732 = vrot.slane %v2724, %v2731
        %v2734 = vunpack.c.l.s4 1983009808
        %v2735 = vunpack.c.0.s8 %v2734
        %v2736 = vlaneseq
        %v2737 = vshrl.u32 %v2736, 7
        %v2738 = vsub.s32 %v2735, %v2737
        %v2739 = vrot.slane %v2725, %v2738
        %v2740 = vcombine.low %v2732, %v2739
        %v2742 = vunpack.c.l.s4 1983009808
        %v2743 = vunpack.c.0.s8 %v2742
        %v2744 = vlaneseq
        %v2745 = vshrl.u32 %v2744, 7
        %v2746 = vsub.s32 %v2743, %v2745
        %v2747 = vrot.slane %v2706, %v2746
        %v2751 = vmul.f32 %v2664, %v2723
        %v2752 = vmul.f32 %v2665, %v2740
        %v2753 = vmul.f32 %v2666, %v2747
        %v2754 = vadd.f32 %v2661, %v2751
        %v2755 = vadd.f32 %v2662, %v2752
        %v2756 = vadd.f32 %v2663, %v2753
        %2757 = vst [vmem:[#allocation2] sm:$0xff] %v2754
        %2758 = vst [vmem:[#allocation2 + $0x8] sm:$0xff] %v2755
        %2759 = vst [vmem:[#allocation2 + $0x10] sm:$0x3] %v2756
        %p2760 = scmp.eq.s32.totalorder %s26, 3
        // Predicated region
        $region45: #{tpu_custom_call.1} parent=31 // pred_check
          %p2761 = pneg %p2760
        $region46: #{tpu_custom_call.1} parent=31 // pred_check_branch
          %2763 = sbr.rel (%p2761) target = $region48
        $region47: #{tpu_custom_call.1} parent=31 // pred_region
          %v2764 = vld [vmem:[#allocation2] sm:$0xff]
          %v2765 = vld [vmem:[#allocation2 + $0x8] sm:$0xff]
          %v2766 = vld [vmem:[#allocation2 + $0x10] sm:$0x3]
          %v2770 = vcombine.high %v2764, %v2764
          %v2772 = vunpack.c.l.s4 1983009808
          %v2773 = vunpack.c.0.s8 %v2772
          %v2774 = vlaneseq
          %v2775 = vshrl.u32 %v2774, 7
          %v2776 = vsub.s32 %v2773, %v2775
          %v2777 = vrot.slane %v2764, %v2776
          %v2779 = vunpack.c.l.s4 1983009808
          %v2780 = vunpack.c.0.s8 %v2779
          %v2781 = vlaneseq
          %v2782 = vshrl.u32 %v2781, 7
          %v2783 = vsub.s32 %v2780, %v2782
          %v2784 = vrot.slane %v2770, %v2783
          %v2785 = vcombine.high %v2777, %v2777
          %v2786 = vcombine.high %v2784, %v2784
          %v2787 = vcombine.high %v2765, %v2765
          %v2789 = vunpack.c.l.s4 1983009808
          %v2790 = vunpack.c.0.s8 %v2789
          %v2791 = vlaneseq
          %v2792 = vshrl.u32 %v2791, 7
          %v2793 = vsub.s32 %v2790, %v2792
          %v2794 = vrot.slane %v2765, %v2793
          %v2796 = vunpack.c.l.s4 1983009808
          %v2797 = vunpack.c.0.s8 %v2796
          %v2798 = vlaneseq
          %v2799 = vshrl.u32 %v2798, 7
          %v2800 = vsub.s32 %v2797, %v2799
          %v2801 = vrot.slane %v2787, %v2800
          %v2802 = vcombine.high %v2794, %v2794
          %v2803 = vcombine.high %v2801, %v2801
          %v2805 = vunpack.c.l.s4 1983009808
          %v2806 = vunpack.c.0.s8 %v2805
          %v2807 = vlaneseq
          %v2808 = vshrl.u32 %v2807, 7
          %v2809 = vsub.s32 %v2806, %v2808
          %v2810 = vrot.slane %v2766, %v2809
          %vm2820 = vcmask 1041408
          %v2821 = vsel %vm2820, %v2777, 0.0
          %v2822 = vsel %vm2820, %v2785, 0.0
          %v2823 = vadd.f32 %v2821, %v2822
          %v2824 = vsel %vm2820, %v2784, 0.0
          %v2825 = vadd.f32 %v2823, %v2824
          %v2826 = vsel %vm2820, %v2786, 0.0
          %v2827 = vadd.f32 %v2825, %v2826
          %v2828 = vsel %vm2820, %v2794, 0.0
          %v2829 = vadd.f32 %v2827, %v2828
          %v2830 = vsel %vm2820, %v2802, 0.0
          %v2831 = vadd.f32 %v2829, %v2830
          %v2832 = vsel %vm2820, %v2801, 0.0
          %v2833 = vadd.f32 %v2831, %v2832
          %v2834 = vsel %vm2820, %v2803, 0.0
          %v2835 = vadd.f32 %v2833, %v2834
          %v2836 = vsel %vm2820, %v2810, 0.0
          %v2837 = vadd.f32 %v2835, %v2836
          %2838 = vadd.xlane.f32.xlu0 %v2837
          %v2839 = vpop.xlane.xlu0 %2838
          %v2840 = vld [vmem:[%s2] sm:$0x1]
          %v2842 = vlaneseq
          %v2843 = vshrl.u32 %v2842, 7
          %v2844 = vsub.s32 0, %v2843
          %v2845 = vrot.slane %v2840, %v2844
          %v2847 = vadd.f32 %v2839, %v2845
          %v2848 = vmax.f32 %v2847, 0.0
          %2849 = vst [vmem:[#allocation8] sm:$0x3] %v2848
        $region48: #{tpu_custom_call.1} parent=31 // pred_fallthru
          _
        // Predicated region
        $region49: #{tpu_custom_call.1} parent=31 // pred_check
          %p2850 = pneg %p126
        $region50: #{tpu_custom_call.1} parent=31 // pred_check_branch
          %2852 = sbr.rel (%p2850) target = $region52
        $region51: #{tpu_custom_call.1} parent=31 // pred_region
          %s2854 = ssub.s32 32, 32
          %2855 = vsyncadd [#allocation5], %s2854
          %s2856 = smul.addr %s25, 32
          %s2857 = scalar_lea.hbm %s3, %s2856
          %s2859 = sshll.u32 [#allocation8], 4
          %s2860 = int_to_ptr.vmem [resolvable:$true] %s2859
          %2862 = dma.vmem_to_hbm [thread:$0]  %s2860, 32, %s2857, [#allocation5]
        $region52: #{tpu_custom_call.1} parent=31 // pred_fallthru
          _
        // Predicated region
        $region53: #{tpu_custom_call.1} parent=31 // pred_check
          %p2863 = pneg %p126
        $region54: #{tpu_custom_call.1} parent=31 // pred_check_branch
          %2865 = sbr.rel (%p2863) target = $region56
        $region55: #{tpu_custom_call.1} parent=31 // pred_region
          %2866 = dma.done [#allocation5], 32
        $region56: #{tpu_custom_call.1} parent=31 // pred_fallthru
          _
      $region32: #{tpu_custom_call.1} parent=5 // pred_fallthru
        _
      %p2867 = scmp.le.s32.totalorder 2, %s16
      // Predicated region
      $region57: #{tpu_custom_call.1} parent=5 // pred_check
        %p2868 = pneg %p2867
      $region58: #{tpu_custom_call.1} parent=5 // pred_check_branch
        %2870 = sbr.rel (%p2868) target = $region60
      $region59: #{tpu_custom_call.1} parent=5 // pred_region
        %s2871 = ssub.s32 %s16, 2
      $region60: #{tpu_custom_call.1} parent=5 // pred_fallthru
        _
    $region6: #{tpu_custom_call.1} parent=1 // loop_footer
      %s20 = sadd.s32 1, %s16
    $region7: #{tpu_custom_call.1} parent=1 // loop_footer_branch
      %15 = sbr.rel target = $region3
    $region8: #{tpu_custom_call.1} parent=1 // loop_exit
      _
    %2872 = vsyncpa [#allocation4], 1
    %s2873 = scalar_lea.sflag [#allocation4], 1
    %2874 = vsyncpa %s2873, 1
    %2875 = vsyncpa [#allocation7], 1
    %s2876 = scalar_lea.sflag [#allocation7], 1
    %2877 = vsyncpa %s2876, 1
    %2878 = vsyncpa [#allocation5], 1
    %s2879 = scalar_lea.sflag [#allocation5], 1
    %2880 = vsyncpa %s2879, 1

</llo_original>
